<compile_context>
chip_gen: v5e
topology: v5e:2x2
jax: 0.10.0
libtpu: 0.0.40
codegen_flags: <defaults>
</compile_context>

<pallas_src>
import jax
import jax.numpy as jnp
from jax.experimental import pallas as pl
from jax.experimental.pallas import tpu as pltpu


def _make_kernel(C, H, W):
    HW = H * W

    def kernel(s1_ref, t1_ref, t2_ref, w1_ref, w2_ref, x_ref, o_ref):
        # x_ref, o_ref : (1, C, H*W) VMEM block = one batch sample (lane-dense)
        # s1, t1       : (C,)     SMEM  bn1 folded scale / shift
        # t2           : (C,)     SMEM  bn2 folded shift (bn2 scale folded into w1)
        # w1           : (C*C,)   SMEM  conv1 1x1 weight (bn2 scale folded), (co, ci)
        # w2           : (C*C*9,) SMEM  conv2 3x3 weight, (co, ci, kh, kw) row-major
        xs = x_ref[0].astype(jnp.float32)                      # (C, HW) residual

        # Boundary-validity masks for the flattened 3x3 window shifts.
        pos = jax.lax.broadcasted_iota(jnp.int32, (1, HW), 1)
        col = pos % W
        m_w = {-1: col > 0, 0: None, 1: col < (W - 1)}         # w + kw in [0, W)
        m_h = {-1: pos >= W, 0: None, 1: pos < (H - 1) * W}    # h + kh in [0, H)
        masks = {}
        for kh in (-1, 0, 1):
            for kw in (-1, 0, 1):
                m = m_h[kh]
                if m_w[kw] is not None:
                    m = m_w[kw] if m is None else m & m_w[kw]
                masks[(kh, kw)] = m

        # a = relu(bn1(x)), one (1, HW) lane-dense row per channel.
        a = [jnp.maximum(s1_ref[ci] * xs[ci:ci + 1] + t1_ref[ci], 0.0)
             for ci in range(C)]

        # c = relu(bn2(conv1(a)))  (bn2 scale folded into w1; t2 is the shift).
        c = []
        for co in range(C):
            acc = t2_ref[co] + w1_ref[co * C] * a[0]
            for ci in range(1, C):
                acc = acc + w1_ref[co * C + ci] * a[ci]
            c.append(jnp.maximum(acc, 0.0))

        # out = conv2(c) + x : 3x3, stride 1, pad 1 (cross-correlation like torch).
        # Each shifted window is built once per (ci, kh, kw) and shared by all
        # C output-channel accumulators (reordered loops, co innermost).
        acc_out = [xs[co:co + 1] for co in range(C)]           # residual init
        for ci in range(C):
            for kh in (-1, 0, 1):
                for kw in (-1, 0, 1):
                    d = kh * W + kw                            # flattened offset
                    if d == 0:
                        win = c[ci]
                    else:
                        # win[p] = c[ci][p + d]  (circular; wrap killed by mask)
                        win = pltpu.roll(c[ci], shift=(-d) % HW, axis=1)
                    m = masks[(kh, kw)]
                    if m is not None:
                        win = jnp.where(m, win, 0.0)
                    for co in range(C):
                        wgt = w2_ref[((co * C + ci) * 3 + (kh + 1)) * 3 + (kw + 1)]
                        acc_out[co] = acc_out[co] + wgt * win

        o_ref[0] = jnp.concatenate(acc_out, axis=0).astype(o_ref.dtype)

    return kernel


def preact_block(x, g1, b1, m1, v1, w1, g2, b2, m2, v2, w2, *, eps=1e-5):
    """Pre-activation basic block, stride=1, inference-mode BatchNorm.

    x:  (N, C, H, W)  NCHW, as in the PyTorch module
    w1: (C, C, 1, 1)  conv1 weight;  w2: (C, C, 3, 3) conv2 weight
    g*, b*, m*, v*: (C,) BN gamma / beta / running_mean / running_var
    """
    N, C, H, W = x.shape
    HW = H * W

    # Fold BN (eval mode) into per-channel scale/shift; fold the bn2 scale into
    # the 1x1 conv weight.  Tiny C-sized one-off wrapper math, no HBM pass on x.
    s1 = (g1 / jnp.sqrt(v1 + eps)).astype(jnp.float32)
    t1 = (b1 - m1 * (g1 / jnp.sqrt(v1 + eps))).astype(jnp.float32)
    s2 = g2 / jnp.sqrt(v2 + eps)
    t2 = (b2 - m2 * s2).astype(jnp.float32)
    w1f = (w1.reshape(C, C) * s2[:, None]).reshape(-1).astype(jnp.float32)
    w2f = w2.reshape(-1).astype(jnp.float32)

    x_flat = x.reshape(N, C, HW)           # free reshape (NCHW is contiguous)

    smem_specs = [pl.BlockSpec(memory_space=pltpu.MemorySpace.SMEM)
                  for _ in range(5)]

    out = pl.pallas_call(
        _make_kernel(C, H, W),
        out_shape=jax.ShapeDtypeStruct((N, C, HW), x.dtype),
        grid_spec=pltpu.PrefetchScalarGridSpec(
            num_scalar_prefetch=0,
            grid=(N,),
            in_specs=smem_specs + [
                pl.BlockSpec((1, C, HW), lambda n: (n, 0, 0)),
            ],
            out_specs=pl.BlockSpec((1, C, HW), lambda n: (n, 0, 0)),
        ),
        compiler_params=pltpu.CompilerParams(
            dimension_semantics=("parallel",)),
    )(s1, t1, t2, w1f, w2f, x_flat)
    return out.reshape(N, C, H, W)


def reference(x, g1, b1, m1, v1, w1, g2, b2, m2, v2, w2, *, eps=1e-5):
    def bn(y, g, b, m, v):
        inv = g / jnp.sqrt(v + eps)
        return y * inv[None, :, None, None] + (b - m * inv)[None, :, None, None]

    dn = ("NCHW", "OIHW", "NCHW")
    a = jnp.maximum(bn(x, g1, b1, m1, v1), 0.0)
    o = jax.lax.conv_general_dilated(a, w1, (1, 1), ((0, 0), (0, 0)),
                                     dimension_numbers=dn,
                                     precision=jax.lax.Precision.HIGHEST)
    o = jnp.maximum(bn(o, g2, b2, m2, v2), 0.0)
    o = jax.lax.conv_general_dilated(o, w2, (1, 1), ((1, 1), (1, 1)),
                                     dimension_numbers=dn,
                                     precision=jax.lax.Precision.HIGHEST)
    return o + x


if __name__ == "__main__":
    N, C, H, W = 2, 4, 16, 16
    key = jax.random.PRNGKey(0)
    ks = jax.random.split(key, 11)

    x = jax.random.normal(ks[0], (N, C, H, W), dtype=jnp.float32)

    g1 = jax.random.uniform(ks[1], (C,), minval=0.5, maxval=1.5, dtype=jnp.float32)
    b1 = 0.1 * jax.random.normal(ks[2], (C,), dtype=jnp.float32)
    m1 = 0.1 * jax.random.normal(ks[3], (C,), dtype=jnp.float32)
    v1 = jax.random.uniform(ks[4], (C,), minval=0.5, maxval=1.5, dtype=jnp.float32)

    g2 = jax.random.uniform(ks[5], (C,), minval=0.5, maxval=1.5, dtype=jnp.float32)
    b2 = 0.1 * jax.random.normal(ks[6], (C,), dtype=jnp.float32)
    m2 = 0.1 * jax.random.normal(ks[7], (C,), dtype=jnp.float32)
    v2 = jax.random.uniform(ks[8], (C,), minval=0.5, maxval=1.5, dtype=jnp.float32)

    # Deterministic conv inits (conv bias=False in the module).
    w1 = jax.random.normal(ks[9], (C, C, 1, 1), dtype=jnp.float32) * (2.0 / C) ** 0.5
    w2 = jax.random.normal(ks[10], (C, C, 3, 3), dtype=jnp.float32) * (2.0 / (9 * C)) ** 0.5

    out = preact_block(x, g1, b1, m1, v1, w1, g2, b2, m2, v2, w2)
    out = jax.block_until_ready(out)

    ref = reference(x, g1, b1, m1, v1, w1, g2, b2, m2, v2, w2)
    assert out.shape == (N, C, H, W), out.shape
    err = float(jnp.max(jnp.abs(out - ref)))
    assert jnp.allclose(out, ref, atol=1e-4, rtol=1e-4), err

    print("KERNEL_OK")
</pallas_src>

<mosaic_0001>
module attributes {stable_mosaic.version = 11 : i64} {
  func.func @kernel(%arg0: i32, %arg1: memref<4xf32, #tpu.memory_space<smem>>, %arg2: memref<4xf32, #tpu.memory_space<smem>>, %arg3: memref<4xf32, #tpu.memory_space<smem>>, %arg4: memref<16xf32, #tpu.memory_space<smem>>, %arg5: memref<144xf32, #tpu.memory_space<smem>>, %arg6: memref<1x4x256xf32, #tpu.memory_space<vmem>>, %arg7: memref<1x4x256xf32, #tpu.memory_space<vmem>>) attributes {dimension_semantics = [#tpu.dimension_semantics<parallel>], iteration_bounds = array<i64: 2>, scalar_prefetch = 0 : i64, scratch_operands = 0 : i64, tpu.core_type = #tpu.core_type<tc>, window_params = [{transform_indices = @transform_0, window_bounds = array<i64: 4>}, {transform_indices = @transform_1, window_bounds = array<i64: 4>}, {transform_indices = @transform_2, window_bounds = array<i64: 4>}, {transform_indices = @transform_3, window_bounds = array<i64: 16>}, {transform_indices = @transform_4, window_bounds = array<i64: 144>}, {transform_indices = @transform_5, window_bounds = array<i64: 1, 4, 256>}, {transform_indices = @transform_6, window_bounds = array<i64: 1, 4, 256>}]} {
    %c0 = arith.constant 0 : index
    %c0_0 = arith.constant 0 : index
    %c0_1 = arith.constant 0 : index
    %0 = vector.load %arg6[%c0, %c0_0, %c0_1] : memref<1x4x256xf32, #tpu.memory_space<vmem>>, vector<1x4x256xf32>
    %1 = vector.shape_cast %0 : vector<1x4x256xf32> to vector<4x256xf32>
    %2 = tpu.iota {dimensions = array<i32: 1>} : vector<1x256xi32>
    %c16_i32 = arith.constant 16 : i32
    %c0_i32 = arith.constant 0 : i32
    %3 = arith.cmpi eq, %c16_i32, %c0_i32 : i32
    %c1_i32 = arith.constant 1 : i32
    %4 = arith.select %3, %c1_i32, %c16_i32 : i32
    %5 = vector.broadcast %4 : i32 to vector<1x256xi32>
    %6 = arith.remsi %2, %5 : vector<1x256xi32>
    %c0_i32_2 = arith.constant 0 : i32
    %7 = vector.broadcast %c0_i32_2 : i32 to vector<1x256xi32>
    %8 = arith.cmpi ne, %6, %7 : vector<1x256xi32>
    %c0_i32_3 = arith.constant 0 : i32
    %9 = vector.broadcast %c0_i32_3 : i32 to vector<1x256xi32>
    %10 = arith.cmpi slt, %6, %9 : vector<1x256xi32>
    %c0_i32_4 = arith.constant 0 : i32
    %11 = arith.cmpi slt, %4, %c0_i32_4 : i32
    %12 = vector.broadcast %11 : i1 to vector<1x256xi1>
    %13 = vector.broadcast %12 : vector<1x256xi1> to vector<1x256xi1>
    %14 = arith.xori %10, %13 : vector<1x256xi1>
    %15 = arith.andi %14, %8 : vector<1x256xi1>
    %16 = vector.broadcast %4 : i32 to vector<1x256xi32>
    %17 = arith.addi %6, %16 : vector<1x256xi32>
    %18 = arith.select %15, %17, %6 : vector<1x256xi1>, vector<1x256xi32>
    %c0_i32_5 = arith.constant 0 : i32
    %19 = vector.broadcast %c0_i32_5 : i32 to vector<1x256xi32>
    %20 = arith.cmpi sgt, %18, %19 : vector<1x256xi32>
    %c15_i32 = arith.constant 15 : i32
    %21 = vector.broadcast %c15_i32 : i32 to vector<1x256xi32>
    %22 = arith.cmpi slt, %18, %21 : vector<1x256xi32>
    %c16_i32_6 = arith.constant 16 : i32
    %23 = vector.broadcast %c16_i32_6 : i32 to vector<1x256xi32>
    %24 = arith.cmpi sge, %2, %23 : vector<1x256xi32>
    %c240_i32 = arith.constant 240 : i32
    %25 = vector.broadcast %c240_i32 : i32 to vector<1x256xi32>
    %26 = arith.cmpi slt, %2, %25 : vector<1x256xi32>
    %27 = arith.andi %24, %20 : vector<1x256xi1>
    %28 = arith.andi %24, %22 : vector<1x256xi1>
    %29 = arith.andi %26, %20 : vector<1x256xi1>
    %30 = arith.andi %26, %22 : vector<1x256xi1>
    %c0_7 = arith.constant 0 : index
    %31 = memref.load %arg1[%c0_7] : memref<4xf32, #tpu.memory_space<smem>>
    %32 = vector.extract_strided_slice %1 {offsets = [0, 0], sizes = [1, 256], strides = [1, 1]} : vector<4x256xf32> to vector<1x256xf32>
    %33 = vector.broadcast %31 : f32 to vector<1x256xf32>
    %34 = arith.mulf %33, %32 : vector<1x256xf32>
    %c0_8 = arith.constant 0 : index
    %35 = memref.load %arg2[%c0_8] : memref<4xf32, #tpu.memory_space<smem>>
    %36 = vector.broadcast %35 : f32 to vector<1x256xf32>
    %37 = arith.addf %34, %36 : vector<1x256xf32>
    %cst = arith.constant 0.000000e+00 : f32
    %38 = vector.broadcast %cst : f32 to vector<1x256xf32>
    %39 = arith.maximumf %37, %38 : vector<1x256xf32>
    %c1 = arith.constant 1 : index
    %40 = memref.load %arg1[%c1] : memref<4xf32, #tpu.memory_space<smem>>
    %41 = vector.extract_strided_slice %1 {offsets = [1, 0], sizes = [1, 256], strides = [1, 1]} : vector<4x256xf32> to vector<1x256xf32>
    %42 = vector.broadcast %40 : f32 to vector<1x256xf32>
    %43 = arith.mulf %42, %41 : vector<1x256xf32>
    %c1_9 = arith.constant 1 : index
    %44 = memref.load %arg2[%c1_9] : memref<4xf32, #tpu.memory_space<smem>>
    %45 = vector.broadcast %44 : f32 to vector<1x256xf32>
    %46 = arith.addf %43, %45 : vector<1x256xf32>
    %cst_10 = arith.constant 0.000000e+00 : f32
    %47 = vector.broadcast %cst_10 : f32 to vector<1x256xf32>
    %48 = arith.maximumf %46, %47 : vector<1x256xf32>
    %c2 = arith.constant 2 : index
    %49 = memref.load %arg1[%c2] : memref<4xf32, #tpu.memory_space<smem>>
    %50 = vector.extract_strided_slice %1 {offsets = [2, 0], sizes = [1, 256], strides = [1, 1]} : vector<4x256xf32> to vector<1x256xf32>
    %51 = vector.broadcast %49 : f32 to vector<1x256xf32>
    %52 = arith.mulf %51, %50 : vector<1x256xf32>
    %c2_11 = arith.constant 2 : index
    %53 = memref.load %arg2[%c2_11] : memref<4xf32, #tpu.memory_space<smem>>
    %54 = vector.broadcast %53 : f32 to vector<1x256xf32>
    %55 = arith.addf %52, %54 : vector<1x256xf32>
    %cst_12 = arith.constant 0.000000e+00 : f32
    %56 = vector.broadcast %cst_12 : f32 to vector<1x256xf32>
    %57 = arith.maximumf %55, %56 : vector<1x256xf32>
    %c3 = arith.constant 3 : index
    %58 = memref.load %arg1[%c3] : memref<4xf32, #tpu.memory_space<smem>>
    %59 = vector.extract_strided_slice %1 {offsets = [3, 0], sizes = [1, 256], strides = [1, 1]} : vector<4x256xf32> to vector<1x256xf32>
    %60 = vector.broadcast %58 : f32 to vector<1x256xf32>
    %61 = arith.mulf %60, %59 : vector<1x256xf32>
    %c3_13 = arith.constant 3 : index
    %62 = memref.load %arg2[%c3_13] : memref<4xf32, #tpu.memory_space<smem>>
    %63 = vector.broadcast %62 : f32 to vector<1x256xf32>
    %64 = arith.addf %61, %63 : vector<1x256xf32>
    %cst_14 = arith.constant 0.000000e+00 : f32
    %65 = vector.broadcast %cst_14 : f32 to vector<1x256xf32>
    %66 = arith.maximumf %64, %65 : vector<1x256xf32>
    %c0_15 = arith.constant 0 : index
    %67 = memref.load %arg3[%c0_15] : memref<4xf32, #tpu.memory_space<smem>>
    %c0_16 = arith.constant 0 : index
    %68 = memref.load %arg4[%c0_16] : memref<16xf32, #tpu.memory_space<smem>>
    %69 = vector.broadcast %68 : f32 to vector<1x256xf32>
    %70 = arith.mulf %69, %39 : vector<1x256xf32>
    %71 = vector.broadcast %67 : f32 to vector<1x256xf32>
    %72 = arith.addf %71, %70 : vector<1x256xf32>
    %c1_17 = arith.constant 1 : index
    %73 = memref.load %arg4[%c1_17] : memref<16xf32, #tpu.memory_space<smem>>
    %74 = vector.broadcast %73 : f32 to vector<1x256xf32>
    %75 = arith.mulf %74, %48 : vector<1x256xf32>
    %76 = arith.addf %72, %75 : vector<1x256xf32>
    %c2_18 = arith.constant 2 : index
    %77 = memref.load %arg4[%c2_18] : memref<16xf32, #tpu.memory_space<smem>>
    %78 = vector.broadcast %77 : f32 to vector<1x256xf32>
    %79 = arith.mulf %78, %57 : vector<1x256xf32>
    %80 = arith.addf %76, %79 : vector<1x256xf32>
    %c3_19 = arith.constant 3 : index
    %81 = memref.load %arg4[%c3_19] : memref<16xf32, #tpu.memory_space<smem>>
    %82 = vector.broadcast %81 : f32 to vector<1x256xf32>
    %83 = arith.mulf %82, %66 : vector<1x256xf32>
    %84 = arith.addf %80, %83 : vector<1x256xf32>
    %cst_20 = arith.constant 0.000000e+00 : f32
    %85 = vector.broadcast %cst_20 : f32 to vector<1x256xf32>
    %86 = arith.maximumf %84, %85 : vector<1x256xf32>
    %c1_21 = arith.constant 1 : index
    %87 = memref.load %arg3[%c1_21] : memref<4xf32, #tpu.memory_space<smem>>
    %c4 = arith.constant 4 : index
    %88 = memref.load %arg4[%c4] : memref<16xf32, #tpu.memory_space<smem>>
    %89 = vector.broadcast %88 : f32 to vector<1x256xf32>
    %90 = arith.mulf %89, %39 : vector<1x256xf32>
    %91 = vector.broadcast %87 : f32 to vector<1x256xf32>
    %92 = arith.addf %91, %90 : vector<1x256xf32>
    %c5 = arith.constant 5 : index
    %93 = memref.load %arg4[%c5] : memref<16xf32, #tpu.memory_space<smem>>
    %94 = vector.broadcast %93 : f32 to vector<1x256xf32>
    %95 = arith.mulf %94, %48 : vector<1x256xf32>
    %96 = arith.addf %92, %95 : vector<1x256xf32>
    %c6 = arith.constant 6 : index
    %97 = memref.load %arg4[%c6] : memref<16xf32, #tpu.memory_space<smem>>
    %98 = vector.broadcast %97 : f32 to vector<1x256xf32>
    %99 = arith.mulf %98, %57 : vector<1x256xf32>
    %100 = arith.addf %96, %99 : vector<1x256xf32>
    %c7 = arith.constant 7 : index
    %101 = memref.load %arg4[%c7] : memref<16xf32, #tpu.memory_space<smem>>
    %102 = vector.broadcast %101 : f32 to vector<1x256xf32>
    %103 = arith.mulf %102, %66 : vector<1x256xf32>
    %104 = arith.addf %100, %103 : vector<1x256xf32>
    %cst_22 = arith.constant 0.000000e+00 : f32
    %105 = vector.broadcast %cst_22 : f32 to vector<1x256xf32>
    %106 = arith.maximumf %104, %105 : vector<1x256xf32>
    %c2_23 = arith.constant 2 : index
    %107 = memref.load %arg3[%c2_23] : memref<4xf32, #tpu.memory_space<smem>>
    %c8 = arith.constant 8 : index
    %108 = memref.load %arg4[%c8] : memref<16xf32, #tpu.memory_space<smem>>
    %109 = vector.broadcast %108 : f32 to vector<1x256xf32>
    %110 = arith.mulf %109, %39 : vector<1x256xf32>
    %111 = vector.broadcast %107 : f32 to vector<1x256xf32>
    %112 = arith.addf %111, %110 : vector<1x256xf32>
    %c9 = arith.constant 9 : index
    %113 = memref.load %arg4[%c9] : memref<16xf32, #tpu.memory_space<smem>>
    %114 = vector.broadcast %113 : f32 to vector<1x256xf32>
    %115 = arith.mulf %114, %48 : vector<1x256xf32>
    %116 = arith.addf %112, %115 : vector<1x256xf32>
    %c10 = arith.constant 10 : index
    %117 = memref.load %arg4[%c10] : memref<16xf32, #tpu.memory_space<smem>>
    %118 = vector.broadcast %117 : f32 to vector<1x256xf32>
    %119 = arith.mulf %118, %57 : vector<1x256xf32>
    %120 = arith.addf %116, %119 : vector<1x256xf32>
    %c11 = arith.constant 11 : index
    %121 = memref.load %arg4[%c11] : memref<16xf32, #tpu.memory_space<smem>>
    %122 = vector.broadcast %121 : f32 to vector<1x256xf32>
    %123 = arith.mulf %122, %66 : vector<1x256xf32>
    %124 = arith.addf %120, %123 : vector<1x256xf32>
    %cst_24 = arith.constant 0.000000e+00 : f32
    %125 = vector.broadcast %cst_24 : f32 to vector<1x256xf32>
    %126 = arith.maximumf %124, %125 : vector<1x256xf32>
    %c3_25 = arith.constant 3 : index
    %127 = memref.load %arg3[%c3_25] : memref<4xf32, #tpu.memory_space<smem>>
    %c12 = arith.constant 12 : index
    %128 = memref.load %arg4[%c12] : memref<16xf32, #tpu.memory_space<smem>>
    %129 = vector.broadcast %128 : f32 to vector<1x256xf32>
    %130 = arith.mulf %129, %39 : vector<1x256xf32>
    %131 = vector.broadcast %127 : f32 to vector<1x256xf32>
    %132 = arith.addf %131, %130 : vector<1x256xf32>
    %c13 = arith.constant 13 : index
    %133 = memref.load %arg4[%c13] : memref<16xf32, #tpu.memory_space<smem>>
    %134 = vector.broadcast %133 : f32 to vector<1x256xf32>
    %135 = arith.mulf %134, %48 : vector<1x256xf32>
    %136 = arith.addf %132, %135 : vector<1x256xf32>
    %c14 = arith.constant 14 : index
    %137 = memref.load %arg4[%c14] : memref<16xf32, #tpu.memory_space<smem>>
    %138 = vector.broadcast %137 : f32 to vector<1x256xf32>
    %139 = arith.mulf %138, %57 : vector<1x256xf32>
    %140 = arith.addf %136, %139 : vector<1x256xf32>
    %c15 = arith.constant 15 : index
    %141 = memref.load %arg4[%c15] : memref<16xf32, #tpu.memory_space<smem>>
    %142 = vector.broadcast %141 : f32 to vector<1x256xf32>
    %143 = arith.mulf %142, %66 : vector<1x256xf32>
    %144 = arith.addf %140, %143 : vector<1x256xf32>
    %cst_26 = arith.constant 0.000000e+00 : f32
    %145 = vector.broadcast %cst_26 : f32 to vector<1x256xf32>
    %146 = arith.maximumf %144, %145 : vector<1x256xf32>
    %147 = vector.extract_strided_slice %1 {offsets = [0, 0], sizes = [1, 256], strides = [1, 1]} : vector<4x256xf32> to vector<1x256xf32>
    %148 = vector.extract_strided_slice %1 {offsets = [1, 0], sizes = [1, 256], strides = [1, 1]} : vector<4x256xf32> to vector<1x256xf32>
    %149 = vector.extract_strided_slice %1 {offsets = [2, 0], sizes = [1, 256], strides = [1, 1]} : vector<4x256xf32> to vector<1x256xf32>
    %150 = vector.extract_strided_slice %1 {offsets = [3, 0], sizes = [1, 256], strides = [1, 1]} : vector<4x256xf32> to vector<1x256xf32>
    %c17_i32 = arith.constant 17 : i32
    %151 = tpu.dynamic_rotate %86 by %c17_i32 dim 1 : vector<1x256xf32>, i32 -> vector<1x256xf32>
    %cst_27 = arith.constant 0.000000e+00 : f32
    %152 = vector.broadcast %cst_27 : f32 to vector<1x256xf32>
    %153 = arith.select %27, %151, %152 : vector<1x256xi1>, vector<1x256xf32>
    %c0_28 = arith.constant 0 : index
    %154 = memref.load %arg5[%c0_28] : memref<144xf32, #tpu.memory_space<smem>>
    %155 = vector.broadcast %154 : f32 to vector<1x256xf32>
    %156 = arith.mulf %155, %153 : vector<1x256xf32>
    %157 = arith.addf %147, %156 : vector<1x256xf32>
    %c36 = arith.constant 36 : index
    %158 = memref.load %arg5[%c36] : memref<144xf32, #tpu.memory_space<smem>>
    %159 = vector.broadcast %158 : f32 to vector<1x256xf32>
    %160 = arith.mulf %159, %153 : vector<1x256xf32>
    %161 = arith.addf %148, %160 : vector<1x256xf32>
    %c72 = arith.constant 72 : index
    %162 = memref.load %arg5[%c72] : memref<144xf32, #tpu.memory_space<smem>>
    %163 = vector.broadcast %162 : f32 to vector<1x256xf32>
    %164 = arith.mulf %163, %153 : vector<1x256xf32>
    %165 = arith.addf %149, %164 : vector<1x256xf32>
    %c108 = arith.constant 108 : index
    %166 = memref.load %arg5[%c108] : memref<144xf32, #tpu.memory_space<smem>>
    %167 = vector.broadcast %166 : f32 to vector<1x256xf32>
    %168 = arith.mulf %167, %153 : vector<1x256xf32>
    %169 = arith.addf %150, %168 : vector<1x256xf32>
    %c16_i32_29 = arith.constant 16 : i32
    %170 = tpu.dynamic_rotate %86 by %c16_i32_29 dim 1 : vector<1x256xf32>, i32 -> vector<1x256xf32>
    %cst_30 = arith.constant 0.000000e+00 : f32
    %171 = vector.broadcast %cst_30 : f32 to vector<1x256xf32>
    %172 = arith.select %24, %170, %171 : vector<1x256xi1>, vector<1x256xf32>
    %c1_31 = arith.constant 1 : index
    %173 = memref.load %arg5[%c1_31] : memref<144xf32, #tpu.memory_space<smem>>
    %174 = vector.broadcast %173 : f32 to vector<1x256xf32>
    %175 = arith.mulf %174, %172 : vector<1x256xf32>
    %176 = arith.addf %157, %175 : vector<1x256xf32>
    %c37 = arith.constant 37 : index
    %177 = memref.load %arg5[%c37] : memref<144xf32, #tpu.memory_space<smem>>
    %178 = vector.broadcast %177 : f32 to vector<1x256xf32>
    %179 = arith.mulf %178, %172 : vector<1x256xf32>
    %180 = arith.addf %161, %179 : vector<1x256xf32>
    %c73 = arith.constant 73 : index
    %181 = memref.load %arg5[%c73] : memref<144xf32, #tpu.memory_space<smem>>
    %182 = vector.broadcast %181 : f32 to vector<1x256xf32>
    %183 = arith.mulf %182, %172 : vector<1x256xf32>
    %184 = arith.addf %165, %183 : vector<1x256xf32>
    %c109 = arith.constant 109 : index
    %185 = memref.load %arg5[%c109] : memref<144xf32, #tpu.memory_space<smem>>
    %186 = vector.broadcast %185 : f32 to vector<1x256xf32>
    %187 = arith.mulf %186, %172 : vector<1x256xf32>
    %188 = arith.addf %169, %187 : vector<1x256xf32>
    %c15_i32_32 = arith.constant 15 : i32
    %189 = tpu.dynamic_rotate %86 by %c15_i32_32 dim 1 : vector<1x256xf32>, i32 -> vector<1x256xf32>
    %cst_33 = arith.constant 0.000000e+00 : f32
    %190 = vector.broadcast %cst_33 : f32 to vector<1x256xf32>
    %191 = arith.select %28, %189, %190 : vector<1x256xi1>, vector<1x256xf32>
    %c2_34 = arith.constant 2 : index
    %192 = memref.load %arg5[%c2_34] : memref<144xf32, #tpu.memory_space<smem>>
    %193 = vector.broadcast %192 : f32 to vector<1x256xf32>
    %194 = arith.mulf %193, %191 : vector<1x256xf32>
    %195 = arith.addf %176, %194 : vector<1x256xf32>
    %c38 = arith.constant 38 : index
    %196 = memref.load %arg5[%c38] : memref<144xf32, #tpu.memory_space<smem>>
    %197 = vector.broadcast %196 : f32 to vector<1x256xf32>
    %198 = arith.mulf %197, %191 : vector<1x256xf32>
    %199 = arith.addf %180, %198 : vector<1x256xf32>
    %c74 = arith.constant 74 : index
    %200 = memref.load %arg5[%c74] : memref<144xf32, #tpu.memory_space<smem>>
    %201 = vector.broadcast %200 : f32 to vector<1x256xf32>
    %202 = arith.mulf %201, %191 : vector<1x256xf32>
    %203 = arith.addf %184, %202 : vector<1x256xf32>
    %c110 = arith.constant 110 : index
    %204 = memref.load %arg5[%c110] : memref<144xf32, #tpu.memory_space<smem>>
    %205 = vector.broadcast %204 : f32 to vector<1x256xf32>
    %206 = arith.mulf %205, %191 : vector<1x256xf32>
    %207 = arith.addf %188, %206 : vector<1x256xf32>
    %c1_i32_35 = arith.constant 1 : i32
    %208 = tpu.dynamic_rotate %86 by %c1_i32_35 dim 1 : vector<1x256xf32>, i32 -> vector<1x256xf32>
    %cst_36 = arith.constant 0.000000e+00 : f32
    %209 = vector.broadcast %cst_36 : f32 to vector<1x256xf32>
    %210 = arith.select %20, %208, %209 : vector<1x256xi1>, vector<1x256xf32>
    %c3_37 = arith.constant 3 : index
    %211 = memref.load %arg5[%c3_37] : memref<144xf32, #tpu.memory_space<smem>>
    %212 = vector.broadcast %211 : f32 to vector<1x256xf32>
    %213 = arith.mulf %212, %210 : vector<1x256xf32>
    %214 = arith.addf %195, %213 : vector<1x256xf32>
    %c39 = arith.constant 39 : index
    %215 = memref.load %arg5[%c39] : memref<144xf32, #tpu.memory_space<smem>>
    %216 = vector.broadcast %215 : f32 to vector<1x256xf32>
    %217 = arith.mulf %216, %210 : vector<1x256xf32>
    %218 = arith.addf %199, %217 : vector<1x256xf32>
    %c75 = arith.constant 75 : index
    %219 = memref.load %arg5[%c75] : memref<144xf32, #tpu.memory_space<smem>>
    %220 = vector.broadcast %219 : f32 to vector<1x256xf32>
    %221 = arith.mulf %220, %210 : vector<1x256xf32>
    %222 = arith.addf %203, %221 : vector<1x256xf32>
    %c111 = arith.constant 111 : index
    %223 = memref.load %arg5[%c111] : memref<144xf32, #tpu.memory_space<smem>>
    %224 = vector.broadcast %223 : f32 to vector<1x256xf32>
    %225 = arith.mulf %224, %210 : vector<1x256xf32>
    %226 = arith.addf %207, %225 : vector<1x256xf32>
    %c4_38 = arith.constant 4 : index
    %227 = memref.load %arg5[%c4_38] : memref<144xf32, #tpu.memory_space<smem>>
    %228 = vector.broadcast %227 : f32 to vector<1x256xf32>
    %229 = arith.mulf %228, %86 : vector<1x256xf32>
    %230 = arith.addf %214, %229 : vector<1x256xf32>
    %c40 = arith.constant 40 : index
    %231 = memref.load %arg5[%c40] : memref<144xf32, #tpu.memory_space<smem>>
    %232 = vector.broadcast %231 : f32 to vector<1x256xf32>
    %233 = arith.mulf %232, %86 : vector<1x256xf32>
    %234 = arith.addf %218, %233 : vector<1x256xf32>
    %c76 = arith.constant 76 : index
    %235 = memref.load %arg5[%c76] : memref<144xf32, #tpu.memory_space<smem>>
    %236 = vector.broadcast %235 : f32 to vector<1x256xf32>
    %237 = arith.mulf %236, %86 : vector<1x256xf32>
    %238 = arith.addf %222, %237 : vector<1x256xf32>
    %c112 = arith.constant 112 : index
    %239 = memref.load %arg5[%c112] : memref<144xf32, #tpu.memory_space<smem>>
    %240 = vector.broadcast %239 : f32 to vector<1x256xf32>
    %241 = arith.mulf %240, %86 : vector<1x256xf32>
    %242 = arith.addf %226, %241 : vector<1x256xf32>
    %c255_i32 = arith.constant 255 : i32
    %243 = tpu.dynamic_rotate %86 by %c255_i32 dim 1 : vector<1x256xf32>, i32 -> vector<1x256xf32>
    %cst_39 = arith.constant 0.000000e+00 : f32
    %244 = vector.broadcast %cst_39 : f32 to vector<1x256xf32>
    %245 = arith.select %22, %243, %244 : vector<1x256xi1>, vector<1x256xf32>
    %c5_40 = arith.constant 5 : index
    %246 = memref.load %arg5[%c5_40] : memref<144xf32, #tpu.memory_space<smem>>
    %247 = vector.broadcast %246 : f32 to vector<1x256xf32>
    %248 = arith.mulf %247, %245 : vector<1x256xf32>
    %249 = arith.addf %230, %248 : vector<1x256xf32>
    %c41 = arith.constant 41 : index
    %250 = memref.load %arg5[%c41] : memref<144xf32, #tpu.memory_space<smem>>
    %251 = vector.broadcast %250 : f32 to vector<1x256xf32>
    %252 = arith.mulf %251, %245 : vector<1x256xf32>
    %253 = arith.addf %234, %252 : vector<1x256xf32>
    %c77 = arith.constant 77 : index
    %254 = memref.load %arg5[%c77] : memref<144xf32, #tpu.memory_space<smem>>
    %255 = vector.broadcast %254 : f32 to vector<1x256xf32>
    %256 = arith.mulf %255, %245 : vector<1x256xf32>
    %257 = arith.addf %238, %256 : vector<1x256xf32>
    %c113 = arith.constant 113 : index
    %258 = memref.load %arg5[%c113] : memref<144xf32, #tpu.memory_space<smem>>
    %259 = vector.broadcast %258 : f32 to vector<1x256xf32>
    %260 = arith.mulf %259, %245 : vector<1x256xf32>
    %261 = arith.addf %242, %260 : vector<1x256xf32>
    %c241_i32 = arith.constant 241 : i32
    %262 = tpu.dynamic_rotate %86 by %c241_i32 dim 1 : vector<1x256xf32>, i32 -> vector<1x256xf32>
    %cst_41 = arith.constant 0.000000e+00 : f32
    %263 = vector.broadcast %cst_41 : f32 to vector<1x256xf32>
    %264 = arith.select %29, %262, %263 : vector<1x256xi1>, vector<1x256xf32>
    %c6_42 = arith.constant 6 : index
    %265 = memref.load %arg5[%c6_42] : memref<144xf32, #tpu.memory_space<smem>>
    %266 = vector.broadcast %265 : f32 to vector<1x256xf32>
    %267 = arith.mulf %266, %264 : vector<1x256xf32>
    %268 = arith.addf %249, %267 : vector<1x256xf32>
    %c42 = arith.constant 42 : index
    %269 = memref.load %arg5[%c42] : memref<144xf32, #tpu.memory_space<smem>>
    %270 = vector.broadcast %269 : f32 to vector<1x256xf32>
    %271 = arith.mulf %270, %264 : vector<1x256xf32>
    %272 = arith.addf %253, %271 : vector<1x256xf32>
    %c78 = arith.constant 78 : index
    %273 = memref.load %arg5[%c78] : memref<144xf32, #tpu.memory_space<smem>>
    %274 = vector.broadcast %273 : f32 to vector<1x256xf32>
    %275 = arith.mulf %274, %264 : vector<1x256xf32>
    %276 = arith.addf %257, %275 : vector<1x256xf32>
    %c114 = arith.constant 114 : index
    %277 = memref.load %arg5[%c114] : memref<144xf32, #tpu.memory_space<smem>>
    %278 = vector.broadcast %277 : f32 to vector<1x256xf32>
    %279 = arith.mulf %278, %264 : vector<1x256xf32>
    %280 = arith.addf %261, %279 : vector<1x256xf32>
    %c240_i32_43 = arith.constant 240 : i32
    %281 = tpu.dynamic_rotate %86 by %c240_i32_43 dim 1 : vector<1x256xf32>, i32 -> vector<1x256xf32>
    %cst_44 = arith.constant 0.000000e+00 : f32
    %282 = vector.broadcast %cst_44 : f32 to vector<1x256xf32>
    %283 = arith.select %26, %281, %282 : vector<1x256xi1>, vector<1x256xf32>
    %c7_45 = arith.constant 7 : index
    %284 = memref.load %arg5[%c7_45] : memref<144xf32, #tpu.memory_space<smem>>
    %285 = vector.broadcast %284 : f32 to vector<1x256xf32>
    %286 = arith.mulf %285, %283 : vector<1x256xf32>
    %287 = arith.addf %268, %286 : vector<1x256xf32>
    %c43 = arith.constant 43 : index
    %288 = memref.load %arg5[%c43] : memref<144xf32, #tpu.memory_space<smem>>
    %289 = vector.broadcast %288 : f32 to vector<1x256xf32>
    %290 = arith.mulf %289, %283 : vector<1x256xf32>
    %291 = arith.addf %272, %290 : vector<1x256xf32>
    %c79 = arith.constant 79 : index
    %292 = memref.load %arg5[%c79] : memref<144xf32, #tpu.memory_space<smem>>
    %293 = vector.broadcast %292 : f32 to vector<1x256xf32>
    %294 = arith.mulf %293, %283 : vector<1x256xf32>
    %295 = arith.addf %276, %294 : vector<1x256xf32>
    %c115 = arith.constant 115 : index
    %296 = memref.load %arg5[%c115] : memref<144xf32, #tpu.memory_space<smem>>
    %297 = vector.broadcast %296 : f32 to vector<1x256xf32>
    %298 = arith.mulf %297, %283 : vector<1x256xf32>
    %299 = arith.addf %280, %298 : vector<1x256xf32>
    %c239_i32 = arith.constant 239 : i32
    %300 = tpu.dynamic_rotate %86 by %c239_i32 dim 1 : vector<1x256xf32>, i32 -> vector<1x256xf32>
    %cst_46 = arith.constant 0.000000e+00 : f32
    %301 = vector.broadcast %cst_46 : f32 to vector<1x256xf32>
    %302 = arith.select %30, %300, %301 : vector<1x256xi1>, vector<1x256xf32>
    %c8_47 = arith.constant 8 : index
    %303 = memref.load %arg5[%c8_47] : memref<144xf32, #tpu.memory_space<smem>>
    %304 = vector.broadcast %303 : f32 to vector<1x256xf32>
    %305 = arith.mulf %304, %302 : vector<1x256xf32>
    %306 = arith.addf %287, %305 : vector<1x256xf32>
    %c44 = arith.constant 44 : index
    %307 = memref.load %arg5[%c44] : memref<144xf32, #tpu.memory_space<smem>>
    %308 = vector.broadcast %307 : f32 to vector<1x256xf32>
    %309 = arith.mulf %308, %302 : vector<1x256xf32>
    %310 = arith.addf %291, %309 : vector<1x256xf32>
    %c80 = arith.constant 80 : index
    %311 = memref.load %arg5[%c80] : memref<144xf32, #tpu.memory_space<smem>>
    %312 = vector.broadcast %311 : f32 to vector<1x256xf32>
    %313 = arith.mulf %312, %302 : vector<1x256xf32>
    %314 = arith.addf %295, %313 : vector<1x256xf32>
    %c116 = arith.constant 116 : index
    %315 = memref.load %arg5[%c116] : memref<144xf32, #tpu.memory_space<smem>>
    %316 = vector.broadcast %315 : f32 to vector<1x256xf32>
    %317 = arith.mulf %316, %302 : vector<1x256xf32>
    %318 = arith.addf %299, %317 : vector<1x256xf32>
    %c17_i32_48 = arith.constant 17 : i32
    %319 = tpu.dynamic_rotate %106 by %c17_i32_48 dim 1 : vector<1x256xf32>, i32 -> vector<1x256xf32>
    %cst_49 = arith.constant 0.000000e+00 : f32
    %320 = vector.broadcast %cst_49 : f32 to vector<1x256xf32>
    %321 = arith.select %27, %319, %320 : vector<1x256xi1>, vector<1x256xf32>
    %c9_50 = arith.constant 9 : index
    %322 = memref.load %arg5[%c9_50] : memref<144xf32, #tpu.memory_space<smem>>
    %323 = vector.broadcast %322 : f32 to vector<1x256xf32>
    %324 = arith.mulf %323, %321 : vector<1x256xf32>
    %325 = arith.addf %306, %324 : vector<1x256xf32>
    %c45 = arith.constant 45 : index
    %326 = memref.load %arg5[%c45] : memref<144xf32, #tpu.memory_space<smem>>
    %327 = vector.broadcast %326 : f32 to vector<1x256xf32>
    %328 = arith.mulf %327, %321 : vector<1x256xf32>
    %329 = arith.addf %310, %328 : vector<1x256xf32>
    %c81 = arith.constant 81 : index
    %330 = memref.load %arg5[%c81] : memref<144xf32, #tpu.memory_space<smem>>
    %331 = vector.broadcast %330 : f32 to vector<1x256xf32>
    %332 = arith.mulf %331, %321 : vector<1x256xf32>
    %333 = arith.addf %314, %332 : vector<1x256xf32>
    %c117 = arith.constant 117 : index
    %334 = memref.load %arg5[%c117] : memref<144xf32, #tpu.memory_space<smem>>
    %335 = vector.broadcast %334 : f32 to vector<1x256xf32>
    %336 = arith.mulf %335, %321 : vector<1x256xf32>
    %337 = arith.addf %318, %336 : vector<1x256xf32>
    %c16_i32_51 = arith.constant 16 : i32
    %338 = tpu.dynamic_rotate %106 by %c16_i32_51 dim 1 : vector<1x256xf32>, i32 -> vector<1x256xf32>
    %cst_52 = arith.constant 0.000000e+00 : f32
    %339 = vector.broadcast %cst_52 : f32 to vector<1x256xf32>
    %340 = arith.select %24, %338, %339 : vector<1x256xi1>, vector<1x256xf32>
    %c10_53 = arith.constant 10 : index
    %341 = memref.load %arg5[%c10_53] : memref<144xf32, #tpu.memory_space<smem>>
    %342 = vector.broadcast %341 : f32 to vector<1x256xf32>
    %343 = arith.mulf %342, %340 : vector<1x256xf32>
    %344 = arith.addf %325, %343 : vector<1x256xf32>
    %c46 = arith.constant 46 : index
    %345 = memref.load %arg5[%c46] : memref<144xf32, #tpu.memory_space<smem>>
    %346 = vector.broadcast %345 : f32 to vector<1x256xf32>
    %347 = arith.mulf %346, %340 : vector<1x256xf32>
    %348 = arith.addf %329, %347 : vector<1x256xf32>
    %c82 = arith.constant 82 : index
    %349 = memref.load %arg5[%c82] : memref<144xf32, #tpu.memory_space<smem>>
    %350 = vector.broadcast %349 : f32 to vector<1x256xf32>
    %351 = arith.mulf %350, %340 : vector<1x256xf32>
    %352 = arith.addf %333, %351 : vector<1x256xf32>
    %c118 = arith.constant 118 : index
    %353 = memref.load %arg5[%c118] : memref<144xf32, #tpu.memory_space<smem>>
    %354 = vector.broadcast %353 : f32 to vector<1x256xf32>
    %355 = arith.mulf %354, %340 : vector<1x256xf32>
    %356 = arith.addf %337, %355 : vector<1x256xf32>
    %c15_i32_54 = arith.constant 15 : i32
    %357 = tpu.dynamic_rotate %106 by %c15_i32_54 dim 1 : vector<1x256xf32>, i32 -> vector<1x256xf32>
    %cst_55 = arith.constant 0.000000e+00 : f32
    %358 = vector.broadcast %cst_55 : f32 to vector<1x256xf32>
    %359 = arith.select %28, %357, %358 : vector<1x256xi1>, vector<1x256xf32>
    %c11_56 = arith.constant 11 : index
    %360 = memref.load %arg5[%c11_56] : memref<144xf32, #tpu.memory_space<smem>>
    %361 = vector.broadcast %360 : f32 to vector<1x256xf32>
    %362 = arith.mulf %361, %359 : vector<1x256xf32>
    %363 = arith.addf %344, %362 : vector<1x256xf32>
    %c47 = arith.constant 47 : index
    %364 = memref.load %arg5[%c47] : memref<144xf32, #tpu.memory_space<smem>>
    %365 = vector.broadcast %364 : f32 to vector<1x256xf32>
    %366 = arith.mulf %365, %359 : vector<1x256xf32>
    %367 = arith.addf %348, %366 : vector<1x256xf32>
    %c83 = arith.constant 83 : index
    %368 = memref.load %arg5[%c83] : memref<144xf32, #tpu.memory_space<smem>>
    %369 = vector.broadcast %368 : f32 to vector<1x256xf32>
    %370 = arith.mulf %369, %359 : vector<1x256xf32>
    %371 = arith.addf %352, %370 : vector<1x256xf32>
    %c119 = arith.constant 119 : index
    %372 = memref.load %arg5[%c119] : memref<144xf32, #tpu.memory_space<smem>>
    %373 = vector.broadcast %372 : f32 to vector<1x256xf32>
    %374 = arith.mulf %373, %359 : vector<1x256xf32>
    %375 = arith.addf %356, %374 : vector<1x256xf32>
    %c1_i32_57 = arith.constant 1 : i32
    %376 = tpu.dynamic_rotate %106 by %c1_i32_57 dim 1 : vector<1x256xf32>, i32 -> vector<1x256xf32>
    %cst_58 = arith.constant 0.000000e+00 : f32
    %377 = vector.broadcast %cst_58 : f32 to vector<1x256xf32>
    %378 = arith.select %20, %376, %377 : vector<1x256xi1>, vector<1x256xf32>
    %c12_59 = arith.constant 12 : index
    %379 = memref.load %arg5[%c12_59] : memref<144xf32, #tpu.memory_space<smem>>
    %380 = vector.broadcast %379 : f32 to vector<1x256xf32>
    %381 = arith.mulf %380, %378 : vector<1x256xf32>
    %382 = arith.addf %363, %381 : vector<1x256xf32>
    %c48 = arith.constant 48 : index
    %383 = memref.load %arg5[%c48] : memref<144xf32, #tpu.memory_space<smem>>
    %384 = vector.broadcast %383 : f32 to vector<1x256xf32>
    %385 = arith.mulf %384, %378 : vector<1x256xf32>
    %386 = arith.addf %367, %385 : vector<1x256xf32>
    %c84 = arith.constant 84 : index
    %387 = memref.load %arg5[%c84] : memref<144xf32, #tpu.memory_space<smem>>
    %388 = vector.broadcast %387 : f32 to vector<1x256xf32>
    %389 = arith.mulf %388, %378 : vector<1x256xf32>
    %390 = arith.addf %371, %389 : vector<1x256xf32>
    %c120 = arith.constant 120 : index
    %391 = memref.load %arg5[%c120] : memref<144xf32, #tpu.memory_space<smem>>
    %392 = vector.broadcast %391 : f32 to vector<1x256xf32>
    %393 = arith.mulf %392, %378 : vector<1x256xf32>
    %394 = arith.addf %375, %393 : vector<1x256xf32>
    %c13_60 = arith.constant 13 : index
    %395 = memref.load %arg5[%c13_60] : memref<144xf32, #tpu.memory_space<smem>>
    %396 = vector.broadcast %395 : f32 to vector<1x256xf32>
    %397 = arith.mulf %396, %106 : vector<1x256xf32>
    %398 = arith.addf %382, %397 : vector<1x256xf32>
    %c49 = arith.constant 49 : index
    %399 = memref.load %arg5[%c49] : memref<144xf32, #tpu.memory_space<smem>>
    %400 = vector.broadcast %399 : f32 to vector<1x256xf32>
    %401 = arith.mulf %400, %106 : vector<1x256xf32>
    %402 = arith.addf %386, %401 : vector<1x256xf32>
    %c85 = arith.constant 85 : index
    %403 = memref.load %arg5[%c85] : memref<144xf32, #tpu.memory_space<smem>>
    %404 = vector.broadcast %403 : f32 to vector<1x256xf32>
    %405 = arith.mulf %404, %106 : vector<1x256xf32>
    %406 = arith.addf %390, %405 : vector<1x256xf32>
    %c121 = arith.constant 121 : index
    %407 = memref.load %arg5[%c121] : memref<144xf32, #tpu.memory_space<smem>>
    %408 = vector.broadcast %407 : f32 to vector<1x256xf32>
    %409 = arith.mulf %408, %106 : vector<1x256xf32>
    %410 = arith.addf %394, %409 : vector<1x256xf32>
    %c255_i32_61 = arith.constant 255 : i32
    %411 = tpu.dynamic_rotate %106 by %c255_i32_61 dim 1 : vector<1x256xf32>, i32 -> vector<1x256xf32>
    %cst_62 = arith.constant 0.000000e+00 : f32
    %412 = vector.broadcast %cst_62 : f32 to vector<1x256xf32>
    %413 = arith.select %22, %411, %412 : vector<1x256xi1>, vector<1x256xf32>
    %c14_63 = arith.constant 14 : index
    %414 = memref.load %arg5[%c14_63] : memref<144xf32, #tpu.memory_space<smem>>
    %415 = vector.broadcast %414 : f32 to vector<1x256xf32>
    %416 = arith.mulf %415, %413 : vector<1x256xf32>
    %417 = arith.addf %398, %416 : vector<1x256xf32>
    %c50 = arith.constant 50 : index
    %418 = memref.load %arg5[%c50] : memref<144xf32, #tpu.memory_space<smem>>
    %419 = vector.broadcast %418 : f32 to vector<1x256xf32>
    %420 = arith.mulf %419, %413 : vector<1x256xf32>
    %421 = arith.addf %402, %420 : vector<1x256xf32>
    %c86 = arith.constant 86 : index
    %422 = memref.load %arg5[%c86] : memref<144xf32, #tpu.memory_space<smem>>
    %423 = vector.broadcast %422 : f32 to vector<1x256xf32>
    %424 = arith.mulf %423, %413 : vector<1x256xf32>
    %425 = arith.addf %406, %424 : vector<1x256xf32>
    %c122 = arith.constant 122 : index
    %426 = memref.load %arg5[%c122] : memref<144xf32, #tpu.memory_space<smem>>
    %427 = vector.broadcast %426 : f32 to vector<1x256xf32>
    %428 = arith.mulf %427, %413 : vector<1x256xf32>
    %429 = arith.addf %410, %428 : vector<1x256xf32>
    %c241_i32_64 = arith.constant 241 : i32
    %430 = tpu.dynamic_rotate %106 by %c241_i32_64 dim 1 : vector<1x256xf32>, i32 -> vector<1x256xf32>
    %cst_65 = arith.constant 0.000000e+00 : f32
    %431 = vector.broadcast %cst_65 : f32 to vector<1x256xf32>
    %432 = arith.select %29, %430, %431 : vector<1x256xi1>, vector<1x256xf32>
    %c15_66 = arith.constant 15 : index
    %433 = memref.load %arg5[%c15_66] : memref<144xf32, #tpu.memory_space<smem>>
    %434 = vector.broadcast %433 : f32 to vector<1x256xf32>
    %435 = arith.mulf %434, %432 : vector<1x256xf32>
    %436 = arith.addf %417, %435 : vector<1x256xf32>
    %c51 = arith.constant 51 : index
    %437 = memref.load %arg5[%c51] : memref<144xf32, #tpu.memory_space<smem>>
    %438 = vector.broadcast %437 : f32 to vector<1x256xf32>
    %439 = arith.mulf %438, %432 : vector<1x256xf32>
    %440 = arith.addf %421, %439 : vector<1x256xf32>
    %c87 = arith.constant 87 : index
    %441 = memref.load %arg5[%c87] : memref<144xf32, #tpu.memory_space<smem>>
    %442 = vector.broadcast %441 : f32 to vector<1x256xf32>
    %443 = arith.mulf %442, %432 : vector<1x256xf32>
    %444 = arith.addf %425, %443 : vector<1x256xf32>
    %c123 = arith.constant 123 : index
    %445 = memref.load %arg5[%c123] : memref<144xf32, #tpu.memory_space<smem>>
    %446 = vector.broadcast %445 : f32 to vector<1x256xf32>
    %447 = arith.mulf %446, %432 : vector<1x256xf32>
    %448 = arith.addf %429, %447 : vector<1x256xf32>
    %c240_i32_67 = arith.constant 240 : i32
    %449 = tpu.dynamic_rotate %106 by %c240_i32_67 dim 1 : vector<1x256xf32>, i32 -> vector<1x256xf32>
    %cst_68 = arith.constant 0.000000e+00 : f32
    %450 = vector.broadcast %cst_68 : f32 to vector<1x256xf32>
    %451 = arith.select %26, %449, %450 : vector<1x256xi1>, vector<1x256xf32>
    %c16 = arith.constant 16 : index
    %452 = memref.load %arg5[%c16] : memref<144xf32, #tpu.memory_space<smem>>
    %453 = vector.broadcast %452 : f32 to vector<1x256xf32>
    %454 = arith.mulf %453, %451 : vector<1x256xf32>
    %455 = arith.addf %436, %454 : vector<1x256xf32>
    %c52 = arith.constant 52 : index
    %456 = memref.load %arg5[%c52] : memref<144xf32, #tpu.memory_space<smem>>
    %457 = vector.broadcast %456 : f32 to vector<1x256xf32>
    %458 = arith.mulf %457, %451 : vector<1x256xf32>
    %459 = arith.addf %440, %458 : vector<1x256xf32>
    %c88 = arith.constant 88 : index
    %460 = memref.load %arg5[%c88] : memref<144xf32, #tpu.memory_space<smem>>
    %461 = vector.broadcast %460 : f32 to vector<1x256xf32>
    %462 = arith.mulf %461, %451 : vector<1x256xf32>
    %463 = arith.addf %444, %462 : vector<1x256xf32>
    %c124 = arith.constant 124 : index
    %464 = memref.load %arg5[%c124] : memref<144xf32, #tpu.memory_space<smem>>
    %465 = vector.broadcast %464 : f32 to vector<1x256xf32>
    %466 = arith.mulf %465, %451 : vector<1x256xf32>
    %467 = arith.addf %448, %466 : vector<1x256xf32>
    %c239_i32_69 = arith.constant 239 : i32
    %468 = tpu.dynamic_rotate %106 by %c239_i32_69 dim 1 : vector<1x256xf32>, i32 -> vector<1x256xf32>
    %cst_70 = arith.constant 0.000000e+00 : f32
    %469 = vector.broadcast %cst_70 : f32 to vector<1x256xf32>
    %470 = arith.select %30, %468, %469 : vector<1x256xi1>, vector<1x256xf32>
    %c17 = arith.constant 17 : index
    %471 = memref.load %arg5[%c17] : memref<144xf32, #tpu.memory_space<smem>>
    %472 = vector.broadcast %471 : f32 to vector<1x256xf32>
    %473 = arith.mulf %472, %470 : vector<1x256xf32>
    %474 = arith.addf %455, %473 : vector<1x256xf32>
    %c53 = arith.constant 53 : index
    %475 = memref.load %arg5[%c53] : memref<144xf32, #tpu.memory_space<smem>>
    %476 = vector.broadcast %475 : f32 to vector<1x256xf32>
    %477 = arith.mulf %476, %470 : vector<1x256xf32>
    %478 = arith.addf %459, %477 : vector<1x256xf32>
    %c89 = arith.constant 89 : index
    %479 = memref.load %arg5[%c89] : memref<144xf32, #tpu.memory_space<smem>>
    %480 = vector.broadcast %479 : f32 to vector<1x256xf32>
    %481 = arith.mulf %480, %470 : vector<1x256xf32>
    %482 = arith.addf %463, %481 : vector<1x256xf32>
    %c125 = arith.constant 125 : index
    %483 = memref.load %arg5[%c125] : memref<144xf32, #tpu.memory_space<smem>>
    %484 = vector.broadcast %483 : f32 to vector<1x256xf32>
    %485 = arith.mulf %484, %470 : vector<1x256xf32>
    %486 = arith.addf %467, %485 : vector<1x256xf32>
    %c17_i32_71 = arith.constant 17 : i32
    %487 = tpu.dynamic_rotate %126 by %c17_i32_71 dim 1 : vector<1x256xf32>, i32 -> vector<1x256xf32>
    %cst_72 = arith.constant 0.000000e+00 : f32
    %488 = vector.broadcast %cst_72 : f32 to vector<1x256xf32>
    %489 = arith.select %27, %487, %488 : vector<1x256xi1>, vector<1x256xf32>
    %c18 = arith.constant 18 : index
    %490 = memref.load %arg5[%c18] : memref<144xf32, #tpu.memory_space<smem>>
    %491 = vector.broadcast %490 : f32 to vector<1x256xf32>
    %492 = arith.mulf %491, %489 : vector<1x256xf32>
    %493 = arith.addf %474, %492 : vector<1x256xf32>
    %c54 = arith.constant 54 : index
    %494 = memref.load %arg5[%c54] : memref<144xf32, #tpu.memory_space<smem>>
    %495 = vector.broadcast %494 : f32 to vector<1x256xf32>
    %496 = arith.mulf %495, %489 : vector<1x256xf32>
    %497 = arith.addf %478, %496 : vector<1x256xf32>
    %c90 = arith.constant 90 : index
    %498 = memref.load %arg5[%c90] : memref<144xf32, #tpu.memory_space<smem>>
    %499 = vector.broadcast %498 : f32 to vector<1x256xf32>
    %500 = arith.mulf %499, %489 : vector<1x256xf32>
    %501 = arith.addf %482, %500 : vector<1x256xf32>
    %c126 = arith.constant 126 : index
    %502 = memref.load %arg5[%c126] : memref<144xf32, #tpu.memory_space<smem>>
    %503 = vector.broadcast %502 : f32 to vector<1x256xf32>
    %504 = arith.mulf %503, %489 : vector<1x256xf32>
    %505 = arith.addf %486, %504 : vector<1x256xf32>
    %c16_i32_73 = arith.constant 16 : i32
    %506 = tpu.dynamic_rotate %126 by %c16_i32_73 dim 1 : vector<1x256xf32>, i32 -> vector<1x256xf32>
    %cst_74 = arith.constant 0.000000e+00 : f32
    %507 = vector.broadcast %cst_74 : f32 to vector<1x256xf32>
    %508 = arith.select %24, %506, %507 : vector<1x256xi1>, vector<1x256xf32>
    %c19 = arith.constant 19 : index
    %509 = memref.load %arg5[%c19] : memref<144xf32, #tpu.memory_space<smem>>
    %510 = vector.broadcast %509 : f32 to vector<1x256xf32>
    %511 = arith.mulf %510, %508 : vector<1x256xf32>
    %512 = arith.addf %493, %511 : vector<1x256xf32>
    %c55 = arith.constant 55 : index
    %513 = memref.load %arg5[%c55] : memref<144xf32, #tpu.memory_space<smem>>
    %514 = vector.broadcast %513 : f32 to vector<1x256xf32>
    %515 = arith.mulf %514, %508 : vector<1x256xf32>
    %516 = arith.addf %497, %515 : vector<1x256xf32>
    %c91 = arith.constant 91 : index
    %517 = memref.load %arg5[%c91] : memref<144xf32, #tpu.memory_space<smem>>
    %518 = vector.broadcast %517 : f32 to vector<1x256xf32>
    %519 = arith.mulf %518, %508 : vector<1x256xf32>
    %520 = arith.addf %501, %519 : vector<1x256xf32>
    %c127 = arith.constant 127 : index
    %521 = memref.load %arg5[%c127] : memref<144xf32, #tpu.memory_space<smem>>
    %522 = vector.broadcast %521 : f32 to vector<1x256xf32>
    %523 = arith.mulf %522, %508 : vector<1x256xf32>
    %524 = arith.addf %505, %523 : vector<1x256xf32>
    %c15_i32_75 = arith.constant 15 : i32
    %525 = tpu.dynamic_rotate %126 by %c15_i32_75 dim 1 : vector<1x256xf32>, i32 -> vector<1x256xf32>
    %cst_76 = arith.constant 0.000000e+00 : f32
    %526 = vector.broadcast %cst_76 : f32 to vector<1x256xf32>
    %527 = arith.select %28, %525, %526 : vector<1x256xi1>, vector<1x256xf32>
    %c20 = arith.constant 20 : index
    %528 = memref.load %arg5[%c20] : memref<144xf32, #tpu.memory_space<smem>>
    %529 = vector.broadcast %528 : f32 to vector<1x256xf32>
    %530 = arith.mulf %529, %527 : vector<1x256xf32>
    %531 = arith.addf %512, %530 : vector<1x256xf32>
    %c56 = arith.constant 56 : index
    %532 = memref.load %arg5[%c56] : memref<144xf32, #tpu.memory_space<smem>>
    %533 = vector.broadcast %532 : f32 to vector<1x256xf32>
    %534 = arith.mulf %533, %527 : vector<1x256xf32>
    %535 = arith.addf %516, %534 : vector<1x256xf32>
    %c92 = arith.constant 92 : index
    %536 = memref.load %arg5[%c92] : memref<144xf32, #tpu.memory_space<smem>>
    %537 = vector.broadcast %536 : f32 to vector<1x256xf32>
    %538 = arith.mulf %537, %527 : vector<1x256xf32>
    %539 = arith.addf %520, %538 : vector<1x256xf32>
    %c128 = arith.constant 128 : index
    %540 = memref.load %arg5[%c128] : memref<144xf32, #tpu.memory_space<smem>>
    %541 = vector.broadcast %540 : f32 to vector<1x256xf32>
    %542 = arith.mulf %541, %527 : vector<1x256xf32>
    %543 = arith.addf %524, %542 : vector<1x256xf32>
    %c1_i32_77 = arith.constant 1 : i32
    %544 = tpu.dynamic_rotate %126 by %c1_i32_77 dim 1 : vector<1x256xf32>, i32 -> vector<1x256xf32>
    %cst_78 = arith.constant 0.000000e+00 : f32
    %545 = vector.broadcast %cst_78 : f32 to vector<1x256xf32>
    %546 = arith.select %20, %544, %545 : vector<1x256xi1>, vector<1x256xf32>
    %c21 = arith.constant 21 : index
    %547 = memref.load %arg5[%c21] : memref<144xf32, #tpu.memory_space<smem>>
    %548 = vector.broadcast %547 : f32 to vector<1x256xf32>
    %549 = arith.mulf %548, %546 : vector<1x256xf32>
    %550 = arith.addf %531, %549 : vector<1x256xf32>
    %c57 = arith.constant 57 : index
    %551 = memref.load %arg5[%c57] : memref<144xf32, #tpu.memory_space<smem>>
    %552 = vector.broadcast %551 : f32 to vector<1x256xf32>
    %553 = arith.mulf %552, %546 : vector<1x256xf32>
    %554 = arith.addf %535, %553 : vector<1x256xf32>
    %c93 = arith.constant 93 : index
    %555 = memref.load %arg5[%c93] : memref<144xf32, #tpu.memory_space<smem>>
    %556 = vector.broadcast %555 : f32 to vector<1x256xf32>
    %557 = arith.mulf %556, %546 : vector<1x256xf32>
    %558 = arith.addf %539, %557 : vector<1x256xf32>
    %c129 = arith.constant 129 : index
    %559 = memref.load %arg5[%c129] : memref<144xf32, #tpu.memory_space<smem>>
    %560 = vector.broadcast %559 : f32 to vector<1x256xf32>
    %561 = arith.mulf %560, %546 : vector<1x256xf32>
    %562 = arith.addf %543, %561 : vector<1x256xf32>
    %c22 = arith.constant 22 : index
    %563 = memref.load %arg5[%c22] : memref<144xf32, #tpu.memory_space<smem>>
    %564 = vector.broadcast %563 : f32 to vector<1x256xf32>
    %565 = arith.mulf %564, %126 : vector<1x256xf32>
    %566 = arith.addf %550, %565 : vector<1x256xf32>
    %c58 = arith.constant 58 : index
    %567 = memref.load %arg5[%c58] : memref<144xf32, #tpu.memory_space<smem>>
    %568 = vector.broadcast %567 : f32 to vector<1x256xf32>
    %569 = arith.mulf %568, %126 : vector<1x256xf32>
    %570 = arith.addf %554, %569 : vector<1x256xf32>
    %c94 = arith.constant 94 : index
    %571 = memref.load %arg5[%c94] : memref<144xf32, #tpu.memory_space<smem>>
    %572 = vector.broadcast %571 : f32 to vector<1x256xf32>
    %573 = arith.mulf %572, %126 : vector<1x256xf32>
    %574 = arith.addf %558, %573 : vector<1x256xf32>
    %c130 = arith.constant 130 : index
    %575 = memref.load %arg5[%c130] : memref<144xf32, #tpu.memory_space<smem>>
    %576 = vector.broadcast %575 : f32 to vector<1x256xf32>
    %577 = arith.mulf %576, %126 : vector<1x256xf32>
    %578 = arith.addf %562, %577 : vector<1x256xf32>
    %c255_i32_79 = arith.constant 255 : i32
    %579 = tpu.dynamic_rotate %126 by %c255_i32_79 dim 1 : vector<1x256xf32>, i32 -> vector<1x256xf32>
    %cst_80 = arith.constant 0.000000e+00 : f32
    %580 = vector.broadcast %cst_80 : f32 to vector<1x256xf32>
    %581 = arith.select %22, %579, %580 : vector<1x256xi1>, vector<1x256xf32>
    %c23 = arith.constant 23 : index
    %582 = memref.load %arg5[%c23] : memref<144xf32, #tpu.memory_space<smem>>
    %583 = vector.broadcast %582 : f32 to vector<1x256xf32>
    %584 = arith.mulf %583, %581 : vector<1x256xf32>
    %585 = arith.addf %566, %584 : vector<1x256xf32>
    %c59 = arith.constant 59 : index
    %586 = memref.load %arg5[%c59] : memref<144xf32, #tpu.memory_space<smem>>
    %587 = vector.broadcast %586 : f32 to vector<1x256xf32>
    %588 = arith.mulf %587, %581 : vector<1x256xf32>
    %589 = arith.addf %570, %588 : vector<1x256xf32>
    %c95 = arith.constant 95 : index
    %590 = memref.load %arg5[%c95] : memref<144xf32, #tpu.memory_space<smem>>
    %591 = vector.broadcast %590 : f32 to vector<1x256xf32>
    %592 = arith.mulf %591, %581 : vector<1x256xf32>
    %593 = arith.addf %574, %592 : vector<1x256xf32>
    %c131 = arith.constant 131 : index
    %594 = memref.load %arg5[%c131] : memref<144xf32, #tpu.memory_space<smem>>
    %595 = vector.broadcast %594 : f32 to vector<1x256xf32>
    %596 = arith.mulf %595, %581 : vector<1x256xf32>
    %597 = arith.addf %578, %596 : vector<1x256xf32>
    %c241_i32_81 = arith.constant 241 : i32
    %598 = tpu.dynamic_rotate %126 by %c241_i32_81 dim 1 : vector<1x256xf32>, i32 -> vector<1x256xf32>
    %cst_82 = arith.constant 0.000000e+00 : f32
    %599 = vector.broadcast %cst_82 : f32 to vector<1x256xf32>
    %600 = arith.select %29, %598, %599 : vector<1x256xi1>, vector<1x256xf32>
    %c24 = arith.constant 24 : index
    %601 = memref.load %arg5[%c24] : memref<144xf32, #tpu.memory_space<smem>>
    %602 = vector.broadcast %601 : f32 to vector<1x256xf32>
    %603 = arith.mulf %602, %600 : vector<1x256xf32>
    %604 = arith.addf %585, %603 : vector<1x256xf32>
    %c60 = arith.constant 60 : index
    %605 = memref.load %arg5[%c60] : memref<144xf32, #tpu.memory_space<smem>>
    %606 = vector.broadcast %605 : f32 to vector<1x256xf32>
    %607 = arith.mulf %606, %600 : vector<1x256xf32>
    %608 = arith.addf %589, %607 : vector<1x256xf32>
    %c96 = arith.constant 96 : index
    %609 = memref.load %arg5[%c96] : memref<144xf32, #tpu.memory_space<smem>>
    %610 = vector.broadcast %609 : f32 to vector<1x256xf32>
    %611 = arith.mulf %610, %600 : vector<1x256xf32>
    %612 = arith.addf %593, %611 : vector<1x256xf32>
    %c132 = arith.constant 132 : index
    %613 = memref.load %arg5[%c132] : memref<144xf32, #tpu.memory_space<smem>>
    %614 = vector.broadcast %613 : f32 to vector<1x256xf32>
    %615 = arith.mulf %614, %600 : vector<1x256xf32>
    %616 = arith.addf %597, %615 : vector<1x256xf32>
    %c240_i32_83 = arith.constant 240 : i32
    %617 = tpu.dynamic_rotate %126 by %c240_i32_83 dim 1 : vector<1x256xf32>, i32 -> vector<1x256xf32>
    %cst_84 = arith.constant 0.000000e+00 : f32
    %618 = vector.broadcast %cst_84 : f32 to vector<1x256xf32>
    %619 = arith.select %26, %617, %618 : vector<1x256xi1>, vector<1x256xf32>
    %c25 = arith.constant 25 : index
    %620 = memref.load %arg5[%c25] : memref<144xf32, #tpu.memory_space<smem>>
    %621 = vector.broadcast %620 : f32 to vector<1x256xf32>
    %622 = arith.mulf %621, %619 : vector<1x256xf32>
    %623 = arith.addf %604, %622 : vector<1x256xf32>
    %c61 = arith.constant 61 : index
    %624 = memref.load %arg5[%c61] : memref<144xf32, #tpu.memory_space<smem>>
    %625 = vector.broadcast %624 : f32 to vector<1x256xf32>
    %626 = arith.mulf %625, %619 : vector<1x256xf32>
    %627 = arith.addf %608, %626 : vector<1x256xf32>
    %c97 = arith.constant 97 : index
    %628 = memref.load %arg5[%c97] : memref<144xf32, #tpu.memory_space<smem>>
    %629 = vector.broadcast %628 : f32 to vector<1x256xf32>
    %630 = arith.mulf %629, %619 : vector<1x256xf32>
    %631 = arith.addf %612, %630 : vector<1x256xf32>
    %c133 = arith.constant 133 : index
    %632 = memref.load %arg5[%c133] : memref<144xf32, #tpu.memory_space<smem>>
    %633 = vector.broadcast %632 : f32 to vector<1x256xf32>
    %634 = arith.mulf %633, %619 : vector<1x256xf32>
    %635 = arith.addf %616, %634 : vector<1x256xf32>
    %c239_i32_85 = arith.constant 239 : i32
    %636 = tpu.dynamic_rotate %126 by %c239_i32_85 dim 1 : vector<1x256xf32>, i32 -> vector<1x256xf32>
    %cst_86 = arith.constant 0.000000e+00 : f32
    %637 = vector.broadcast %cst_86 : f32 to vector<1x256xf32>
    %638 = arith.select %30, %636, %637 : vector<1x256xi1>, vector<1x256xf32>
    %c26 = arith.constant 26 : index
    %639 = memref.load %arg5[%c26] : memref<144xf32, #tpu.memory_space<smem>>
    %640 = vector.broadcast %639 : f32 to vector<1x256xf32>
    %641 = arith.mulf %640, %638 : vector<1x256xf32>
    %642 = arith.addf %623, %641 : vector<1x256xf32>
    %c62 = arith.constant 62 : index
    %643 = memref.load %arg5[%c62] : memref<144xf32, #tpu.memory_space<smem>>
    %644 = vector.broadcast %643 : f32 to vector<1x256xf32>
    %645 = arith.mulf %644, %638 : vector<1x256xf32>
    %646 = arith.addf %627, %645 : vector<1x256xf32>
    %c98 = arith.constant 98 : index
    %647 = memref.load %arg5[%c98] : memref<144xf32, #tpu.memory_space<smem>>
    %648 = vector.broadcast %647 : f32 to vector<1x256xf32>
    %649 = arith.mulf %648, %638 : vector<1x256xf32>
    %650 = arith.addf %631, %649 : vector<1x256xf32>
    %c134 = arith.constant 134 : index
    %651 = memref.load %arg5[%c134] : memref<144xf32, #tpu.memory_space<smem>>
    %652 = vector.broadcast %651 : f32 to vector<1x256xf32>
    %653 = arith.mulf %652, %638 : vector<1x256xf32>
    %654 = arith.addf %635, %653 : vector<1x256xf32>
    %c17_i32_87 = arith.constant 17 : i32
    %655 = tpu.dynamic_rotate %146 by %c17_i32_87 dim 1 : vector<1x256xf32>, i32 -> vector<1x256xf32>
    %cst_88 = arith.constant 0.000000e+00 : f32
    %656 = vector.broadcast %cst_88 : f32 to vector<1x256xf32>
    %657 = arith.select %27, %655, %656 : vector<1x256xi1>, vector<1x256xf32>
    %c27 = arith.constant 27 : index
    %658 = memref.load %arg5[%c27] : memref<144xf32, #tpu.memory_space<smem>>
    %659 = vector.broadcast %658 : f32 to vector<1x256xf32>
    %660 = arith.mulf %659, %657 : vector<1x256xf32>
    %661 = arith.addf %642, %660 : vector<1x256xf32>
    %c63 = arith.constant 63 : index
    %662 = memref.load %arg5[%c63] : memref<144xf32, #tpu.memory_space<smem>>
    %663 = vector.broadcast %662 : f32 to vector<1x256xf32>
    %664 = arith.mulf %663, %657 : vector<1x256xf32>
    %665 = arith.addf %646, %664 : vector<1x256xf32>
    %c99 = arith.constant 99 : index
    %666 = memref.load %arg5[%c99] : memref<144xf32, #tpu.memory_space<smem>>
    %667 = vector.broadcast %666 : f32 to vector<1x256xf32>
    %668 = arith.mulf %667, %657 : vector<1x256xf32>
    %669 = arith.addf %650, %668 : vector<1x256xf32>
    %c135 = arith.constant 135 : index
    %670 = memref.load %arg5[%c135] : memref<144xf32, #tpu.memory_space<smem>>
    %671 = vector.broadcast %670 : f32 to vector<1x256xf32>
    %672 = arith.mulf %671, %657 : vector<1x256xf32>
    %673 = arith.addf %654, %672 : vector<1x256xf32>
    %c16_i32_89 = arith.constant 16 : i32
    %674 = tpu.dynamic_rotate %146 by %c16_i32_89 dim 1 : vector<1x256xf32>, i32 -> vector<1x256xf32>
    %cst_90 = arith.constant 0.000000e+00 : f32
    %675 = vector.broadcast %cst_90 : f32 to vector<1x256xf32>
    %676 = arith.select %24, %674, %675 : vector<1x256xi1>, vector<1x256xf32>
    %c28 = arith.constant 28 : index
    %677 = memref.load %arg5[%c28] : memref<144xf32, #tpu.memory_space<smem>>
    %678 = vector.broadcast %677 : f32 to vector<1x256xf32>
    %679 = arith.mulf %678, %676 : vector<1x256xf32>
    %680 = arith.addf %661, %679 : vector<1x256xf32>
    %c64 = arith.constant 64 : index
    %681 = memref.load %arg5[%c64] : memref<144xf32, #tpu.memory_space<smem>>
    %682 = vector.broadcast %681 : f32 to vector<1x256xf32>
    %683 = arith.mulf %682, %676 : vector<1x256xf32>
    %684 = arith.addf %665, %683 : vector<1x256xf32>
    %c100 = arith.constant 100 : index
    %685 = memref.load %arg5[%c100] : memref<144xf32, #tpu.memory_space<smem>>
    %686 = vector.broadcast %685 : f32 to vector<1x256xf32>
    %687 = arith.mulf %686, %676 : vector<1x256xf32>
    %688 = arith.addf %669, %687 : vector<1x256xf32>
    %c136 = arith.constant 136 : index
    %689 = memref.load %arg5[%c136] : memref<144xf32, #tpu.memory_space<smem>>
    %690 = vector.broadcast %689 : f32 to vector<1x256xf32>
    %691 = arith.mulf %690, %676 : vector<1x256xf32>
    %692 = arith.addf %673, %691 : vector<1x256xf32>
    %c15_i32_91 = arith.constant 15 : i32
    %693 = tpu.dynamic_rotate %146 by %c15_i32_91 dim 1 : vector<1x256xf32>, i32 -> vector<1x256xf32>
    %cst_92 = arith.constant 0.000000e+00 : f32
    %694 = vector.broadcast %cst_92 : f32 to vector<1x256xf32>
    %695 = arith.select %28, %693, %694 : vector<1x256xi1>, vector<1x256xf32>
    %c29 = arith.constant 29 : index
    %696 = memref.load %arg5[%c29] : memref<144xf32, #tpu.memory_space<smem>>
    %697 = vector.broadcast %696 : f32 to vector<1x256xf32>
    %698 = arith.mulf %697, %695 : vector<1x256xf32>
    %699 = arith.addf %680, %698 : vector<1x256xf32>
    %c65 = arith.constant 65 : index
    %700 = memref.load %arg5[%c65] : memref<144xf32, #tpu.memory_space<smem>>
    %701 = vector.broadcast %700 : f32 to vector<1x256xf32>
    %702 = arith.mulf %701, %695 : vector<1x256xf32>
    %703 = arith.addf %684, %702 : vector<1x256xf32>
    %c101 = arith.constant 101 : index
    %704 = memref.load %arg5[%c101] : memref<144xf32, #tpu.memory_space<smem>>
    %705 = vector.broadcast %704 : f32 to vector<1x256xf32>
    %706 = arith.mulf %705, %695 : vector<1x256xf32>
    %707 = arith.addf %688, %706 : vector<1x256xf32>
    %c137 = arith.constant 137 : index
    %708 = memref.load %arg5[%c137] : memref<144xf32, #tpu.memory_space<smem>>
    %709 = vector.broadcast %708 : f32 to vector<1x256xf32>
    %710 = arith.mulf %709, %695 : vector<1x256xf32>
    %711 = arith.addf %692, %710 : vector<1x256xf32>
    %c1_i32_93 = arith.constant 1 : i32
    %712 = tpu.dynamic_rotate %146 by %c1_i32_93 dim 1 : vector<1x256xf32>, i32 -> vector<1x256xf32>
    %cst_94 = arith.constant 0.000000e+00 : f32
    %713 = vector.broadcast %cst_94 : f32 to vector<1x256xf32>
    %714 = arith.select %20, %712, %713 : vector<1x256xi1>, vector<1x256xf32>
    %c30 = arith.constant 30 : index
    %715 = memref.load %arg5[%c30] : memref<144xf32, #tpu.memory_space<smem>>
    %716 = vector.broadcast %715 : f32 to vector<1x256xf32>
    %717 = arith.mulf %716, %714 : vector<1x256xf32>
    %718 = arith.addf %699, %717 : vector<1x256xf32>
    %c66 = arith.constant 66 : index
    %719 = memref.load %arg5[%c66] : memref<144xf32, #tpu.memory_space<smem>>
    %720 = vector.broadcast %719 : f32 to vector<1x256xf32>
    %721 = arith.mulf %720, %714 : vector<1x256xf32>
    %722 = arith.addf %703, %721 : vector<1x256xf32>
    %c102 = arith.constant 102 : index
    %723 = memref.load %arg5[%c102] : memref<144xf32, #tpu.memory_space<smem>>
    %724 = vector.broadcast %723 : f32 to vector<1x256xf32>
    %725 = arith.mulf %724, %714 : vector<1x256xf32>
    %726 = arith.addf %707, %725 : vector<1x256xf32>
    %c138 = arith.constant 138 : index
    %727 = memref.load %arg5[%c138] : memref<144xf32, #tpu.memory_space<smem>>
    %728 = vector.broadcast %727 : f32 to vector<1x256xf32>
    %729 = arith.mulf %728, %714 : vector<1x256xf32>
    %730 = arith.addf %711, %729 : vector<1x256xf32>
    %c31 = arith.constant 31 : index
    %731 = memref.load %arg5[%c31] : memref<144xf32, #tpu.memory_space<smem>>
    %732 = vector.broadcast %731 : f32 to vector<1x256xf32>
    %733 = arith.mulf %732, %146 : vector<1x256xf32>
    %734 = arith.addf %718, %733 : vector<1x256xf32>
    %c67 = arith.constant 67 : index
    %735 = memref.load %arg5[%c67] : memref<144xf32, #tpu.memory_space<smem>>
    %736 = vector.broadcast %735 : f32 to vector<1x256xf32>
    %737 = arith.mulf %736, %146 : vector<1x256xf32>
    %738 = arith.addf %722, %737 : vector<1x256xf32>
    %c103 = arith.constant 103 : index
    %739 = memref.load %arg5[%c103] : memref<144xf32, #tpu.memory_space<smem>>
    %740 = vector.broadcast %739 : f32 to vector<1x256xf32>
    %741 = arith.mulf %740, %146 : vector<1x256xf32>
    %742 = arith.addf %726, %741 : vector<1x256xf32>
    %c139 = arith.constant 139 : index
    %743 = memref.load %arg5[%c139] : memref<144xf32, #tpu.memory_space<smem>>
    %744 = vector.broadcast %743 : f32 to vector<1x256xf32>
    %745 = arith.mulf %744, %146 : vector<1x256xf32>
    %746 = arith.addf %730, %745 : vector<1x256xf32>
    %c255_i32_95 = arith.constant 255 : i32
    %747 = tpu.dynamic_rotate %146 by %c255_i32_95 dim 1 : vector<1x256xf32>, i32 -> vector<1x256xf32>
    %cst_96 = arith.constant 0.000000e+00 : f32
    %748 = vector.broadcast %cst_96 : f32 to vector<1x256xf32>
    %749 = arith.select %22, %747, %748 : vector<1x256xi1>, vector<1x256xf32>
    %c32 = arith.constant 32 : index
    %750 = memref.load %arg5[%c32] : memref<144xf32, #tpu.memory_space<smem>>
    %751 = vector.broadcast %750 : f32 to vector<1x256xf32>
    %752 = arith.mulf %751, %749 : vector<1x256xf32>
    %753 = arith.addf %734, %752 : vector<1x256xf32>
    %c68 = arith.constant 68 : index
    %754 = memref.load %arg5[%c68] : memref<144xf32, #tpu.memory_space<smem>>
    %755 = vector.broadcast %754 : f32 to vector<1x256xf32>
    %756 = arith.mulf %755, %749 : vector<1x256xf32>
    %757 = arith.addf %738, %756 : vector<1x256xf32>
    %c104 = arith.constant 104 : index
    %758 = memref.load %arg5[%c104] : memref<144xf32, #tpu.memory_space<smem>>
    %759 = vector.broadcast %758 : f32 to vector<1x256xf32>
    %760 = arith.mulf %759, %749 : vector<1x256xf32>
    %761 = arith.addf %742, %760 : vector<1x256xf32>
    %c140 = arith.constant 140 : index
    %762 = memref.load %arg5[%c140] : memref<144xf32, #tpu.memory_space<smem>>
    %763 = vector.broadcast %762 : f32 to vector<1x256xf32>
    %764 = arith.mulf %763, %749 : vector<1x256xf32>
    %765 = arith.addf %746, %764 : vector<1x256xf32>
    %c241_i32_97 = arith.constant 241 : i32
    %766 = tpu.dynamic_rotate %146 by %c241_i32_97 dim 1 : vector<1x256xf32>, i32 -> vector<1x256xf32>
    %cst_98 = arith.constant 0.000000e+00 : f32
    %767 = vector.broadcast %cst_98 : f32 to vector<1x256xf32>
    %768 = arith.select %29, %766, %767 : vector<1x256xi1>, vector<1x256xf32>
    %c33 = arith.constant 33 : index
    %769 = memref.load %arg5[%c33] : memref<144xf32, #tpu.memory_space<smem>>
    %770 = vector.broadcast %769 : f32 to vector<1x256xf32>
    %771 = arith.mulf %770, %768 : vector<1x256xf32>
    %772 = arith.addf %753, %771 : vector<1x256xf32>
    %c69 = arith.constant 69 : index
    %773 = memref.load %arg5[%c69] : memref<144xf32, #tpu.memory_space<smem>>
    %774 = vector.broadcast %773 : f32 to vector<1x256xf32>
    %775 = arith.mulf %774, %768 : vector<1x256xf32>
    %776 = arith.addf %757, %775 : vector<1x256xf32>
    %c105 = arith.constant 105 : index
    %777 = memref.load %arg5[%c105] : memref<144xf32, #tpu.memory_space<smem>>
    %778 = vector.broadcast %777 : f32 to vector<1x256xf32>
    %779 = arith.mulf %778, %768 : vector<1x256xf32>
    %780 = arith.addf %761, %779 : vector<1x256xf32>
    %c141 = arith.constant 141 : index
    %781 = memref.load %arg5[%c141] : memref<144xf32, #tpu.memory_space<smem>>
    %782 = vector.broadcast %781 : f32 to vector<1x256xf32>
    %783 = arith.mulf %782, %768 : vector<1x256xf32>
    %784 = arith.addf %765, %783 : vector<1x256xf32>
    %c240_i32_99 = arith.constant 240 : i32
    %785 = tpu.dynamic_rotate %146 by %c240_i32_99 dim 1 : vector<1x256xf32>, i32 -> vector<1x256xf32>
    %cst_100 = arith.constant 0.000000e+00 : f32
    %786 = vector.broadcast %cst_100 : f32 to vector<1x256xf32>
    %787 = arith.select %26, %785, %786 : vector<1x256xi1>, vector<1x256xf32>
    %c34 = arith.constant 34 : index
    %788 = memref.load %arg5[%c34] : memref<144xf32, #tpu.memory_space<smem>>
    %789 = vector.broadcast %788 : f32 to vector<1x256xf32>
    %790 = arith.mulf %789, %787 : vector<1x256xf32>
    %791 = arith.addf %772, %790 : vector<1x256xf32>
    %c70 = arith.constant 70 : index
    %792 = memref.load %arg5[%c70] : memref<144xf32, #tpu.memory_space<smem>>
    %793 = vector.broadcast %792 : f32 to vector<1x256xf32>
    %794 = arith.mulf %793, %787 : vector<1x256xf32>
    %795 = arith.addf %776, %794 : vector<1x256xf32>
    %c106 = arith.constant 106 : index
    %796 = memref.load %arg5[%c106] : memref<144xf32, #tpu.memory_space<smem>>
    %797 = vector.broadcast %796 : f32 to vector<1x256xf32>
    %798 = arith.mulf %797, %787 : vector<1x256xf32>
    %799 = arith.addf %780, %798 : vector<1x256xf32>
    %c142 = arith.constant 142 : index
    %800 = memref.load %arg5[%c142] : memref<144xf32, #tpu.memory_space<smem>>
    %801 = vector.broadcast %800 : f32 to vector<1x256xf32>
    %802 = arith.mulf %801, %787 : vector<1x256xf32>
    %803 = arith.addf %784, %802 : vector<1x256xf32>
    %c239_i32_101 = arith.constant 239 : i32
    %804 = tpu.dynamic_rotate %146 by %c239_i32_101 dim 1 : vector<1x256xf32>, i32 -> vector<1x256xf32>
    %cst_102 = arith.constant 0.000000e+00 : f32
    %805 = vector.broadcast %cst_102 : f32 to vector<1x256xf32>
    %806 = arith.select %30, %804, %805 : vector<1x256xi1>, vector<1x256xf32>
    %c35 = arith.constant 35 : index
    %807 = memref.load %arg5[%c35] : memref<144xf32, #tpu.memory_space<smem>>
    %808 = vector.broadcast %807 : f32 to vector<1x256xf32>
    %809 = arith.mulf %808, %806 : vector<1x256xf32>
    %810 = arith.addf %791, %809 : vector<1x256xf32>
    %c71 = arith.constant 71 : index
    %811 = memref.load %arg5[%c71] : memref<144xf32, #tpu.memory_space<smem>>
    %812 = vector.broadcast %811 : f32 to vector<1x256xf32>
    %813 = arith.mulf %812, %806 : vector<1x256xf32>
    %814 = arith.addf %795, %813 : vector<1x256xf32>
    %c107 = arith.constant 107 : index
    %815 = memref.load %arg5[%c107] : memref<144xf32, #tpu.memory_space<smem>>
    %816 = vector.broadcast %815 : f32 to vector<1x256xf32>
    %817 = arith.mulf %816, %806 : vector<1x256xf32>
    %818 = arith.addf %799, %817 : vector<1x256xf32>
    %c143 = arith.constant 143 : index
    %819 = memref.load %arg5[%c143] : memref<144xf32, #tpu.memory_space<smem>>
    %820 = vector.broadcast %819 : f32 to vector<1x256xf32>
    %821 = arith.mulf %820, %806 : vector<1x256xf32>
    %822 = arith.addf %803, %821 : vector<1x256xf32>
    %823 = tpu.concatenate %810, %814, %818, %822 in 0 : vector<1x256xf32>, vector<1x256xf32>, vector<1x256xf32>, vector<1x256xf32> -> vector<4x256xf32>
    %c0_103 = arith.constant 0 : index
    %c0_104 = arith.constant 0 : index
    %c0_105 = arith.constant 0 : index
    %824 = vector.load %arg7[%c0_103, %c0_104, %c0_105] : memref<1x4x256xf32, #tpu.memory_space<vmem>>, vector<1x4x256xf32>
    %825 = vector.shape_cast %824 : vector<1x4x256xf32> to vector<4x256xf32>
    %826 = vector.shape_cast %823 : vector<4x256xf32> to vector<1x4x256xf32>
    tpu.vector_store %arg7[%c0_103, %c0_104, %c0_105], %826 {strides = array<i32>} : memref<1x4x256xf32, #tpu.memory_space<vmem>>, vector<1x4x256xf32>,
    return
  }
  func.func @transform_0(%arg0: i32) -> i32 {
    %c0_i32 = arith.constant 0 : i32
    %c0_i32_0 = arith.constant 0 : i32
    return %c0_i32 : i32
  }
  func.func @transform_1(%arg0: i32) -> i32 {
    %c0_i32 = arith.constant 0 : i32
    %c0_i32_0 = arith.constant 0 : i32
    return %c0_i32 : i32
  }
  func.func @transform_2(%arg0: i32) -> i32 {
    %c0_i32 = arith.constant 0 : i32
    %c0_i32_0 = arith.constant 0 : i32
    return %c0_i32 : i32
  }
  func.func @transform_3(%arg0: i32) -> i32 {
    %c0_i32 = arith.constant 0 : i32
    %c0_i32_0 = arith.constant 0 : i32
    return %c0_i32 : i32
  }
  func.func @transform_4(%arg0: i32) -> i32 {
    %c0_i32 = arith.constant 0 : i32
    %c0_i32_0 = arith.constant 0 : i32
    return %c0_i32 : i32
  }
  func.func @transform_5(%arg0: i32) -> (i32, i32, i32) {
    %c0_i32 = arith.constant 0 : i32
    %c0_i32_0 = arith.constant 0 : i32
    %c0_i32_1 = arith.constant 0 : i32
    return %arg0, %c0_i32, %c0_i32_0 : i32, i32, i32
  }
  func.func @transform_6(%arg0: i32) -> (i32, i32, i32) {
    %c0_i32 = arith.constant 0 : i32
    %c0_i32_0 = arith.constant 0 : i32
    %c0_i32_1 = arith.constant 0 : i32
    return %arg0, %c0_i32, %c0_i32_0 : i32, i32, i32
  }
}

</mosaic_0001>

<llo_original>
// kernel: tpu_custom_call.1
$region0: #{tpu_custom_call.1}
  #allocation0 [shape = 'u32[]', space=smem, size = 0x4, offset = 0x4, fixed_abs, tag = 'smem constant byte address 0x4 - core index']
  #allocation1 [shape = 'u32[72,128]{1,0:T(1,128)}', space=vmem, size = 0x9000, scoped, tag = 'internal scratch']
  %s0 = inlined_call_operand.hbm [shape: f32[4], index: 0, kind: input, shape index: {}]
  %s1 = inlined_call_operand.hbm [shape: f32[4], index: 1, kind: input, shape index: {}]
  %s2 = inlined_call_operand.vmem [shape: f32[4], index: 2, kind: input, shape index: {}]
  %s3 = inlined_call_operand.hbm [shape: f32[16], index: 3, kind: input, shape index: {}]
  %s4 = inlined_call_operand.vmem [shape: f32[144], index: 4, kind: input, shape index: {}]
  %s5 = inlined_call_operand.hbm [shape: f32[2,4,256], index: 5, kind: input, shape index: {}]
  %s6 = inlined_call_operand.hbm [shape: f32[2,4,256], index: 6, kind: output, shape index: {}]
  %s7 = sld [smem:[#allocation0]]
  $region81: #{tpu_custom_call.1} parent=0
    _
  %s9 = ssub.s32 1, %s7
  %s10 = scalar_select 0, %s9, %s7
  $region1: #{tpu_custom_call.1} parent=0
    #allocation2 [shape = 'u8[512]{0}', space=smem, size = 0x200, scoped, tag = 'input window, operand 0, single buffered']
    #allocation3 [shape = 's32[2]{0}', space=sflag, size = 0x8, scoped, tag = 'scoped memory for tpu_custom_call.1']
    #allocation4 [shape = 's32[2]{0}', space=sflag, size = 0x8, scoped, tag = 'scoped memory for tpu_custom_call.1']
    #allocation5 [shape = 's32[2]{0}', space=sflag, size = 0x8, scoped, tag = 'scoped memory for tpu_custom_call.1']
    #allocation6 [shape = 's32[2]{0}', space=sflag, size = 0x8, scoped, tag = 'scoped memory for tpu_custom_call.1']
    #allocation7 [shape = 'u8[512]{0}', space=smem, size = 0x200, scoped, tag = 'input window, operand 1, single buffered']
    #allocation8 [shape = 's32[1]{0}', space=sflag, size = 0x4, scoped, tag = 'scoped memory for tpu_custom_call.1']
    #allocation9 [shape = 'u8[512]{0}', space=smem, size = 0x200, scoped, tag = 'input window, operand 2, single buffered']
    #allocation10 [shape = 'u8[512]{0}', space=smem, size = 0x200, scoped, tag = 'input window, operand 3, single buffered']
    #allocation11 [shape = 'u8[1024]{0}', space=smem, size = 0x400, scoped, tag = 'input window, operand 4, single buffered']
    #allocation12 [shape = 's32[1]{0}', space=sflag, size = 0x4, scoped, tag = 'scoped memory for tpu_custom_call.1']
    #allocation13 [shape = 'u8[8192]{0}', space=vmem, size = 0x2000, scoped, tag = 'input window, operand 5']
    #allocation14 [shape = 'u8[8192]{0}', space=vmem, size = 0x2000, scoped, tag = 'output window, operand 0']
    %11 = vsyncpa [#allocation5], 0
    %12 = vsyncpa [#allocation8], 0
    %13 = vsyncpa [#allocation6], 0
    %14 = vsyncpa [#allocation12], 0
    %15 = vsyncpa [#allocation3], 0
    %s16 = scalar_lea.sflag [#allocation3], 1
    %17 = vsyncpa %s16, 0
    %18 = vsyncpa [#allocation4], 0
    %s19 = scalar_lea.sflag [#allocation4], 1
    %20 = vsyncpa %s19, 0
    loop: start=0, step=1, limit=4
    $region2: #{tpu_custom_call.1} parent=1 // loop_pre_header
      _
    $region3: #{tpu_custom_call.1} parent=1 // loop_header
      %s22 = sphi 0, %s26
      %p23 = scmp.ge.s32.totalorder %s22, 4
      %s30 = sphi 0, %s30
      %s32 = sphi 0, %s30
      %s33 = sphi 0, %s32
      %s47 = sphi 0, %s33
      %s51 = sphi 0, %s51
      %s53 = sphi 0, %s51
      %s54 = sphi 0, %s53
      %s68 = sphi 0, %s54
      %s72 = sphi 0, %s72
      %s74 = sphi 0, %s72
      %s75 = sphi 0, %s74
      %s89 = sphi 0, %s75
      %s93 = sphi 0, %s93
      %s95 = sphi 0, %s93
      %s96 = sphi 0, %s95
      %s110 = sphi 0, %s96
      %s114 = sphi 0, %s114
      %s116 = sphi 0, %s114
      %s117 = sphi 0, %s116
      %s131 = sphi 0, %s117
      %s137 = sphi 0, %s139
      %s140 = sphi 0, %s137
      %s141 = sphi 0, %s140
      %s157 = sphi 0, %s141
      %s163 = sphi 0, %s165
      %s166 = sphi 0, %s163
      %s167 = sphi 0, %s166
      %s183 = sphi 0, %s167
    $region4: #{tpu_custom_call.1} parent=1 // loop_header_branch
      %25 = sbr.rel (%p23) target = $region8
    $region5: #{tpu_custom_call.1} parent=1 // loop_body
      %s27 = ssub.s32 %s22, 1
      %s28 = ssub.s32 %s22, 2
      %s29 = sadd.s32 %s22, 1
      %s31 = sadd.s32 %s30, 1
      %p34 = scmp.eq.s32.totalorder %s22, 1
      %p35 = scmp.ne.s32.totalorder %s30, %s32
      %p36 = scmp.eq.s32.totalorder %s22, 0
      %p37 = por %p35, %p36
      %p38 = scmp.ne.s32.totalorder %s30, %s32
      %p39 = scmp.eq.s32.totalorder %s27, 1
      %p40 = por %p38, %p39
      %p41 = scmp.ne.s32.totalorder %s32, %s33
      %p42 = scmp.eq.s32.totalorder %s27, 0
      %p43 = por %p41, %p42
      %p44 = scmp.ne.s32.totalorder %s32, %s33
      %p45 = scmp.eq.s32.totalorder %s28, 1
      %p46 = por %p44, %p45
      %p48 = scmp.ne.s32.totalorder %s33, %s47
      %p49 = scmp.eq.s32.totalorder %s28, 0
      %p50 = por %p48, %p49
      %s52 = sadd.s32 %s51, 1
      %p55 = scmp.eq.s32.totalorder %s22, 1
      %p56 = scmp.ne.s32.totalorder %s51, %s53
      %p57 = scmp.eq.s32.totalorder %s22, 0
      %p58 = por %p56, %p57
      %p59 = scmp.ne.s32.totalorder %s51, %s53
      %p60 = scmp.eq.s32.totalorder %s27, 1
      %p61 = por %p59, %p60
      %p62 = scmp.ne.s32.totalorder %s53, %s54
      %p63 = scmp.eq.s32.totalorder %s27, 0
      %p64 = por %p62, %p63
      %p65 = scmp.ne.s32.totalorder %s53, %s54
      %p66 = scmp.eq.s32.totalorder %s28, 1
      %p67 = por %p65, %p66
      %p69 = scmp.ne.s32.totalorder %s54, %s68
      %p70 = scmp.eq.s32.totalorder %s28, 0
      %p71 = por %p69, %p70
      %s73 = sadd.s32 %s72, 1
      %p76 = scmp.eq.s32.totalorder %s22, 1
      %p77 = scmp.ne.s32.totalorder %s72, %s74
      %p78 = scmp.eq.s32.totalorder %s22, 0
      %p79 = por %p77, %p78
      %p80 = scmp.ne.s32.totalorder %s72, %s74
      %p81 = scmp.eq.s32.totalorder %s27, 1
      %p82 = por %p80, %p81
      %p83 = scmp.ne.s32.totalorder %s74, %s75
      %p84 = scmp.eq.s32.totalorder %s27, 0
      %p85 = por %p83, %p84
      %p86 = scmp.ne.s32.totalorder %s74, %s75
      %p87 = scmp.eq.s32.totalorder %s28, 1
      %p88 = por %p86, %p87
      %p90 = scmp.ne.s32.totalorder %s75, %s89
      %p91 = scmp.eq.s32.totalorder %s28, 0
      %p92 = por %p90, %p91
      %s94 = sadd.s32 %s93, 1
      %p97 = scmp.eq.s32.totalorder %s22, 1
      %p98 = scmp.ne.s32.totalorder %s93, %s95
      %p99 = scmp.eq.s32.totalorder %s22, 0
      %p100 = por %p98, %p99
      %p101 = scmp.ne.s32.totalorder %s93, %s95
      %p102 = scmp.eq.s32.totalorder %s27, 1
      %p103 = por %p101, %p102
      %p104 = scmp.ne.s32.totalorder %s95, %s96
      %p105 = scmp.eq.s32.totalorder %s27, 0
      %p106 = por %p104, %p105
      %p107 = scmp.ne.s32.totalorder %s95, %s96
      %p108 = scmp.eq.s32.totalorder %s28, 1
      %p109 = por %p107, %p108
      %p111 = scmp.ne.s32.totalorder %s96, %s110
      %p112 = scmp.eq.s32.totalorder %s28, 0
      %p113 = por %p111, %p112
      %s115 = sadd.s32 %s114, 1
      %p118 = scmp.eq.s32.totalorder %s22, 1
      %p119 = scmp.ne.s32.totalorder %s114, %s116
      %p120 = scmp.eq.s32.totalorder %s22, 0
      %p121 = por %p119, %p120
      %p122 = scmp.ne.s32.totalorder %s114, %s116
      %p123 = scmp.eq.s32.totalorder %s27, 1
      %p124 = por %p122, %p123
      %p125 = scmp.ne.s32.totalorder %s116, %s117
      %p126 = scmp.eq.s32.totalorder %s27, 0
      %p127 = por %p125, %p126
      %p128 = scmp.ne.s32.totalorder %s116, %s117
      %p129 = scmp.eq.s32.totalorder %s28, 1
      %p130 = por %p128, %p129
      %p132 = scmp.ne.s32.totalorder %s117, %s131
      %p133 = scmp.eq.s32.totalorder %s28, 0
      %p134 = por %p132, %p133
      %s135 = ssub.s32 %s22, %s29
      %p136 = scmp.eq.s32.totalorder %s135, 0
      %s138 = sadd.s32 %s137, 1
      %s139 = scalar_select %p136, %s137, %s138
      %p142 = pneg %p136
      %p143 = scmp.eq.s32.totalorder %s22, 1
      %p144 = por %p142, %p143
      %p145 = scmp.ne.s32.totalorder %s137, %s140
      %p146 = scmp.eq.s32.totalorder %s22, 0
      %p147 = por %p145, %p146
      %p148 = scmp.ne.s32.totalorder %s137, %s140
      %p149 = scmp.eq.s32.totalorder %s27, 1
      %p150 = por %p148, %p149
      %p151 = scmp.ne.s32.totalorder %s140, %s141
      %p152 = scmp.eq.s32.totalorder %s27, 0
      %p153 = por %p151, %p152
      %p154 = scmp.ne.s32.totalorder %s140, %s141
      %p155 = scmp.eq.s32.totalorder %s28, 1
      %p156 = por %p154, %p155
      %p158 = scmp.ne.s32.totalorder %s141, %s157
      %p159 = scmp.eq.s32.totalorder %s28, 0
      %p160 = por %p158, %p159
      %s161 = ssub.s32 %s22, %s29
      %p162 = scmp.eq.s32.totalorder %s161, 0
      %s164 = sadd.s32 %s163, 1
      %s165 = scalar_select %p162, %s163, %s164
      %p168 = pneg %p162
      %p169 = scmp.eq.s32.totalorder %s22, 1
      %p170 = por %p168, %p169
      %p171 = scmp.ne.s32.totalorder %s163, %s166
      %p172 = scmp.eq.s32.totalorder %s22, 0
      %p173 = por %p171, %p172
      %p174 = scmp.ne.s32.totalorder %s163, %s166
      %p175 = scmp.eq.s32.totalorder %s27, 1
      %p176 = por %p174, %p175
      %p177 = scmp.ne.s32.totalorder %s166, %s167
      %p178 = scmp.eq.s32.totalorder %s27, 0
      %p179 = por %p177, %p178
      %p180 = scmp.ne.s32.totalorder %s166, %s167
      %p181 = scmp.eq.s32.totalorder %s28, 1
      %p182 = por %p180, %p181
      %p184 = scmp.ne.s32.totalorder %s167, %s183
      %p185 = scmp.eq.s32.totalorder %s28, 0
      %p186 = por %p184, %p185
      %p187 = scmp.le.s32.totalorder 1, %s22
      %p188 = scmp.lt.s32.totalorder %s22, 3
      %p189 = pnand %p187, %p188
      %p190 = pneg %p189
      // Predicated region
      $region9: #{tpu_custom_call.1} parent=5 // pred_check
        _
      $region10: #{tpu_custom_call.1} parent=5 // pred_check_branch
        %192 = sbr.rel (%p189) target = $region12
      $region11: #{tpu_custom_call.1} parent=5 // pred_region
        %s193 = ssub.s32 %s22, 1
        // Predicated region
        $region13: #{tpu_custom_call.1} parent=11 // pred_check
          %p194 = pneg %p43
        $region14: #{tpu_custom_call.1} parent=11 // pred_check_branch
          %196 = sbr.rel (%p194) target = $region16
        $region15: #{tpu_custom_call.1} parent=11 // pred_region
          %198 = vsyncadd [#allocation5], 0
          %s200 = sshll.u32 %s0, 4
          %s201 = int_to_ptr.hbm [resolvable:$true] %s200
          %203 = dma.hbm_to_smem %s201, 16, [#allocation2], [#allocation5]
        $region16: #{tpu_custom_call.1} parent=11 // pred_fallthru
          _
        // Predicated region
        $region17: #{tpu_custom_call.1} parent=11 // pred_check
          %p204 = pneg %p64
        $region18: #{tpu_custom_call.1} parent=11 // pred_check_branch
          %206 = sbr.rel (%p204) target = $region20
        $region19: #{tpu_custom_call.1} parent=11 // pred_region
          %208 = vsyncadd [#allocation8], 0
          %s210 = sshll.u32 %s1, 4
          %s211 = int_to_ptr.hbm [resolvable:$true] %s210
          %213 = dma.hbm_to_smem %s211, 16, [#allocation7], [#allocation8]
        $region20: #{tpu_custom_call.1} parent=11 // pred_fallthru
          _
        // Predicated region
        $region21: #{tpu_custom_call.1} parent=11 // pred_check
          %p214 = pneg %p85
        $region22: #{tpu_custom_call.1} parent=11 // pred_check_branch
          %216 = sbr.rel (%p214) target = $region24
        $region23: #{tpu_custom_call.1} parent=11 // pred_region
          %218 = vsyncadd [#allocation6], 0
          %s220 = sshll.u32 %s2, 4
          %s221 = int_to_ptr.vmem [resolvable:$true] %s220
          %223 = dma.vmem_to_smem %s221, 16, [#allocation9], [#allocation6]
        $region24: #{tpu_custom_call.1} parent=11 // pred_fallthru
          _
        // Predicated region
        $region25: #{tpu_custom_call.1} parent=11 // pred_check
          %p224 = pneg %p106
        $region26: #{tpu_custom_call.1} parent=11 // pred_check_branch
          %226 = sbr.rel (%p224) target = $region28
        $region27: #{tpu_custom_call.1} parent=11 // pred_region
          %228 = vsyncadd [#allocation8], 0
          %s230 = sshll.u32 %s3, 4
          %s231 = int_to_ptr.hbm [resolvable:$true] %s230
          %233 = dma.hbm_to_smem %s231, 16, [#allocation10], [#allocation8]
        $region28: #{tpu_custom_call.1} parent=11 // pred_fallthru
          _
        // Predicated region
        $region29: #{tpu_custom_call.1} parent=11 // pred_check
          %p234 = pneg %p127
        $region30: #{tpu_custom_call.1} parent=11 // pred_check_branch
          %236 = sbr.rel (%p234) target = $region32
        $region31: #{tpu_custom_call.1} parent=11 // pred_region
          %238 = vsyncadd [#allocation12], 0
          %s240 = sshll.u32 %s4, 4
          %s241 = int_to_ptr.vmem [resolvable:$true] %s240
          %243 = dma.vmem_to_smem %s241, 32, [#allocation11], [#allocation12]
        $region32: #{tpu_custom_call.1} parent=11 // pred_fallthru
          _
      $region12: #{tpu_custom_call.1} parent=5 // pred_fallthru
        _
      %p244 = scmp.lt.s32.totalorder %s22, 2
      // Predicated region
      $region33: #{tpu_custom_call.1} parent=5 // pred_check
        %p245 = pneg %p244
      $region34: #{tpu_custom_call.1} parent=5 // pred_check_branch
        %247 = sbr.rel (%p245) target = $region36
      $region35: #{tpu_custom_call.1} parent=5 // pred_region
        // Predicated region
        $region37: #{tpu_custom_call.1} parent=35 // pred_check
          %p248 = pneg %p147
        $region38: #{tpu_custom_call.1} parent=35 // pred_check_branch
          %250 = sbr.rel (%p248) target = $region40
        $region39: #{tpu_custom_call.1} parent=35 // pred_region
          %s251 = sand.u32 %s137, 1
          %s252 = scalar_lea.sflag [#allocation3], %s251
          %s253 = sand.u32 %s137, 1
          %s254 = smul.addr %s253, 8
          %s255 = scalar_lea.vmem [#allocation13], %s254
          %257 = vsyncadd %s252, 0
          %s258 = smul.addr %s22, 2
          %s259 = smul.addr %s258, 4
          %s260 = scalar_lea.hbm %s5, %s259
          %s262 = sshll.u32 %s260, 4
          %s263 = int_to_ptr.hbm [resolvable:$true] %s262
          %s264 = sshll.u32 %s255, 4
          %s265 = int_to_ptr.vmem [resolvable:$true] %s264
          %267 = dma.hbm_to_vmem [thread:$0]  %s263, 128, %s265, %s252
        $region40: #{tpu_custom_call.1} parent=35 // pred_fallthru
          _
      $region36: #{tpu_custom_call.1} parent=5 // pred_fallthru
        _
      %p268 = scmp.le.s32.totalorder 1, %s22
      %p269 = scmp.lt.s32.totalorder %s22, 3
      %p270 = pnand %p268, %p269
      %p271 = pneg %p270
      // Predicated region
      $region41: #{tpu_custom_call.1} parent=5 // pred_check
        _
      $region42: #{tpu_custom_call.1} parent=5 // pred_check_branch
        %273 = sbr.rel (%p270) target = $region44
      $region43: #{tpu_custom_call.1} parent=5 // pred_region
        %s274 = ssub.s32 %s22, 1
        // Predicated region
        $region45: #{tpu_custom_call.1} parent=43 // pred_check
          %p275 = pneg %p43
        $region46: #{tpu_custom_call.1} parent=43 // pred_check_branch
          %277 = sbr.rel (%p275) target = $region48
        $region47: #{tpu_custom_call.1} parent=43 // pred_region
          %279 = dma.done [#allocation5], 16
        $region48: #{tpu_custom_call.1} parent=43 // pred_fallthru
          _
        // Predicated region
        $region49: #{tpu_custom_call.1} parent=43 // pred_check
          %p280 = pneg %p64
        $region50: #{tpu_custom_call.1} parent=43 // pred_check_branch
          %282 = sbr.rel (%p280) target = $region52
        $region51: #{tpu_custom_call.1} parent=43 // pred_region
          %284 = dma.done [#allocation8], 16
        $region52: #{tpu_custom_call.1} parent=43 // pred_fallthru
          _
        // Predicated region
        $region53: #{tpu_custom_call.1} parent=43 // pred_check
          %p285 = pneg %p85
        $region54: #{tpu_custom_call.1} parent=43 // pred_check_branch
          %287 = sbr.rel (%p285) target = $region56
        $region55: #{tpu_custom_call.1} parent=43 // pred_region
          %289 = dma.done [#allocation6], 16
        $region56: #{tpu_custom_call.1} parent=43 // pred_fallthru
          _
        // Predicated region
        $region57: #{tpu_custom_call.1} parent=43 // pred_check
          %p290 = pneg %p106
        $region58: #{tpu_custom_call.1} parent=43 // pred_check_branch
          %292 = sbr.rel (%p290) target = $region60
        $region59: #{tpu_custom_call.1} parent=43 // pred_region
          %294 = dma.done [#allocation8], 16
        $region60: #{tpu_custom_call.1} parent=43 // pred_fallthru
          _
        // Predicated region
        $region61: #{tpu_custom_call.1} parent=43 // pred_check
          %p295 = pneg %p127
        $region62: #{tpu_custom_call.1} parent=43 // pred_check_branch
          %297 = sbr.rel (%p295) target = $region64
        $region63: #{tpu_custom_call.1} parent=43 // pred_region
          %299 = dma.done [#allocation12], 32
        $region64: #{tpu_custom_call.1} parent=43 // pred_fallthru
          _
        %s300 = sand.u32 %s140, 1
        %s301 = scalar_lea.sflag [#allocation3], %s300
        %s302 = sand.u32 %s140, 1
        %s303 = smul.addr %s302, 8
        %s304 = scalar_lea.vmem [#allocation13], %s303
        // Predicated region
        $region65: #{tpu_custom_call.1} parent=43 // pred_check
          %p305 = pneg %p153
        $region66: #{tpu_custom_call.1} parent=43 // pred_check_branch
          %307 = sbr.rel (%p305) target = $region68
        $region67: #{tpu_custom_call.1} parent=43 // pred_region
          %309 = dma.done %s301, 128
        $region68: #{tpu_custom_call.1} parent=43 // pred_fallthru
          _
        %310 = sfence
        %p311 = pneg %p43
        %p312 = pneg %p40
        %p313 = pneg %p64
        %p314 = pneg %p61
        %p315 = pneg %p85
        %p316 = pneg %p82
        %p317 = pneg %p106
        %p318 = pneg %p103
        %p319 = pneg %p127
        %p320 = pneg %p124
        %s321 = sand.u32 %s140, 1
        %s322 = scalar_lea.sflag [#allocation3], %s321
        %s323 = sand.u32 %s140, 1
        %s324 = smul.addr %s323, 8
        %s325 = scalar_lea.vmem [#allocation13], %s324
        %p326 = pneg %p153
        %p327 = pneg %p150
        %p328 = pneg %p179
        %p329 = pneg %p176
        %s330 = sand.u32 %s166, 1
        %s331 = scalar_lea.sflag [#allocation4], %s330
        %s332 = sand.u32 %s166, 1
        %s333 = smul.addr %s332, 8
        %s334 = scalar_lea.vmem [#allocation14], %s333
        %v335 = vld [vmem:[%s304] sm:$0xff]
        %v336 = vlaneseq
        %v337 = vand.u32 %v336, 127
        %v338 = vadd.s32 %v337, 128
        %vm339 = vcmp.lt.s32.totalorder %v337, 0
        %v340 = vsub.s32 0, %v337
        %v341 = vsel %vm339, %v340, %v337
        %v342 = vshrl.u32 %v341, 4
        %v343 = vand.u32 %v341, 15
        %v344 = vsub.s32 0, %v343
        %v345 = vsel %vm339, %v344, %v343
        %vm346 = vcmp.lt.s32.totalorder %v338, 0
        %v347 = vsub.s32 0, %v338
        %v348 = vsel %vm346, %v347, %v338
        %v349 = vshrl.u32 %v348, 4
        %v350 = vand.u32 %v348, 15
        %v351 = vsub.s32 0, %v350
        %v352 = vsel %vm346, %v351, %v350
        %vm353 = vcmp.ne.s32.totalorder %v345, 0
        %vm354 = vcmp.ne.s32.totalorder %v352, 0
        %vm355 = vcmp.lt.s32.totalorder %v345, 0
        %vm356 = vcmp.lt.s32.totalorder %v352, 0
        %vm357 = vmand %vm355, %vm353
        %vm358 = vmand %vm356, %vm354
        %v359 = vadd.s32 %v345, 16
        %v360 = vadd.s32 %v352, 16
        %v361 = vsel %vm357, %v359, %v345
        %v362 = vsel %vm358, %v360, %v352
        %vm363 = vcmp.gt.s32.totalorder %v361, 0
        %vm364 = vcmp.gt.s32.totalorder %v362, 0
        %vm365 = vcmp.lt.s32.totalorder %v361, 15
        %vm366 = vcmp.lt.s32.totalorder %v362, 15
        %vm367 = vcmp.ge.s32.totalorder %v337, 16
        %vm368 = vcmp.ge.s32.totalorder %v338, 16
        %vm369 = vcmp.lt.s32.totalorder %v337, 240
        %vm370 = vcmp.lt.s32.totalorder %v338, 240
        %vm371 = vmand %vm367, %vm363
        %vm372 = vmand %vm368, %vm364
        %vm373 = vmand %vm367, %vm365
        %vm374 = vmand %vm368, %vm366
        %vm375 = vmand %vm369, %vm363
        %vm376 = vmand %vm370, %vm364
        %vm377 = vmand %vm369, %vm365
        %vm378 = vmand %vm370, %vm366
        %s379 = sld [smem:[#allocation2]]
        %v380 = vstv %s379
        %v381 = vmul.f32 %v380, %v335
        %s382 = sld [smem:[#allocation7]]
        %v383 = vstv %s382
        %v384 = vadd.f32 %v381, %v383
        %v385 = vmax.f32 %v384, 0.0
        %s386 = sld [smem:[#allocation2 + $0x1]]
        %v387 = vstv %s386
        %v388 = vmul.f32 %v387, %v335
        %s389 = sld [smem:[#allocation7 + $0x1]]
        %v390 = vstv %s389
        %v391 = vadd.f32 %v388, %v390
        %v392 = vmax.f32 %v391, 0.0
        %s393 = sld [smem:[#allocation2 + $0x2]]
        %v394 = vstv %s393
        %v395 = vmul.f32 %v394, %v335
        %s396 = sld [smem:[#allocation7 + $0x2]]
        %v397 = vstv %s396
        %v398 = vadd.f32 %v395, %v397
        %v399 = vmax.f32 %v398, 0.0
        %s400 = sld [smem:[#allocation2 + $0x3]]
        %v401 = vstv %s400
        %v402 = vmul.f32 %v401, %v335
        %s403 = sld [smem:[#allocation7 + $0x3]]
        %v404 = vstv %s403
        %v405 = vadd.f32 %v402, %v404
        %v406 = vmax.f32 %v405, 0.0
        %s407 = sld [smem:[#allocation9]]
        %s408 = sld [smem:[#allocation10]]
        %v409 = vstv %s408
        %v410 = vmul.f32 %v409, %v385
        %v411 = vstv %s407
        %v412 = vadd.f32 %v411, %v410
        %s413 = sld [smem:[#allocation10 + $0x1]]
        %v414 = vstv %s413
        %v415 = vmul.f32 %v414, %v392
        %v417 = vrot.slane %v415, 5
        %v418 = vrot.slane %v417, 4
        %v420 = vadd.f32 %v412, %v418
        %s421 = sld [smem:[#allocation10 + $0x2]]
        %v422 = vstv %s421
        %v423 = vmul.f32 %v422, %v399
        %v425 = vrot.slane %v423, 6
        %v426 = vrot.slane %v425, 4
        %v428 = vadd.f32 %v420, %v426
        %s429 = sld [smem:[#allocation10 + $0x3]]
        %v430 = vstv %s429
        %v431 = vmul.f32 %v430, %v406
        %v433 = vrot.slane %v431, 7
        %v434 = vrot.slane %v433, 4
        %v436 = vadd.f32 %v428, %v434
        %v437 = vmax.f32 %v436, 0.0
        %s438 = sld [smem:[#allocation9 + $0x1]]
        %s439 = sld [smem:[#allocation10 + $0x4]]
        %v440 = vstv %s439
        %v441 = vmul.f32 %v440, %v385
        %v442 = vstv %s438
        %v443 = vadd.f32 %v442, %v441
        %s444 = sld [smem:[#allocation10 + $0x5]]
        %v445 = vstv %s444
        %v446 = vmul.f32 %v445, %v392
        %v448 = vrot.slane %v446, 5
        %v449 = vrot.slane %v448, 4
        %v451 = vadd.f32 %v443, %v449
        %s452 = sld [smem:[#allocation10 + $0x6]]
        %v453 = vstv %s452
        %v454 = vmul.f32 %v453, %v399
        %v456 = vrot.slane %v454, 6
        %v457 = vrot.slane %v456, 4
        %v459 = vadd.f32 %v451, %v457
        %s460 = sld [smem:[#allocation10 + $0x7]]
        %v461 = vstv %s460
        %v462 = vmul.f32 %v461, %v406
        %v464 = vrot.slane %v462, 7
        %v465 = vrot.slane %v464, 4
        %v467 = vadd.f32 %v459, %v465
        %v468 = vmax.f32 %v467, 0.0
        %s469 = sld [smem:[#allocation9 + $0x2]]
        %s470 = sld [smem:[#allocation10 + $0x8]]
        %v471 = vstv %s470
        %v472 = vmul.f32 %v471, %v385
        %v473 = vstv %s469
        %v474 = vadd.f32 %v473, %v472
        %s475 = sld [smem:[#allocation10 + $0x9]]
        %v476 = vstv %s475
        %v477 = vmul.f32 %v476, %v392
        %v479 = vrot.slane %v477, 5
        %v480 = vrot.slane %v479, 4
        %v482 = vadd.f32 %v474, %v480
        %s483 = sld [smem:[#allocation10 + $0xa]]
        %v484 = vstv %s483
        %v485 = vmul.f32 %v484, %v399
        %v487 = vrot.slane %v485, 6
        %v488 = vrot.slane %v487, 4
        %v490 = vadd.f32 %v482, %v488
        %s491 = sld [smem:[#allocation10 + $0xb]]
        %v492 = vstv %s491
        %v493 = vmul.f32 %v492, %v406
        %v495 = vrot.slane %v493, 7
        %v496 = vrot.slane %v495, 4
        %v498 = vadd.f32 %v490, %v496
        %v499 = vmax.f32 %v498, 0.0
        %s500 = sld [smem:[#allocation9 + $0x3]]
        %s501 = sld [smem:[#allocation10 + $0xc]]
        %v502 = vstv %s501
        %v503 = vmul.f32 %v502, %v385
        %v504 = vstv %s500
        %v505 = vadd.f32 %v504, %v503
        %s506 = sld [smem:[#allocation10 + $0xd]]
        %v507 = vstv %s506
        %v508 = vmul.f32 %v507, %v392
        %v510 = vrot.slane %v508, 5
        %v511 = vrot.slane %v510, 4
        %v513 = vadd.f32 %v505, %v511
        %s514 = sld [smem:[#allocation10 + $0xe]]
        %v515 = vstv %s514
        %v516 = vmul.f32 %v515, %v399
        %v518 = vrot.slane %v516, 6
        %v519 = vrot.slane %v518, 4
        %v521 = vadd.f32 %v513, %v519
        %s522 = sld [smem:[#allocation10 + $0xf]]
        %v523 = vstv %s522
        %v524 = vmul.f32 %v523, %v406
        %v526 = vrot.slane %v524, 7
        %v527 = vrot.slane %v526, 4
        %v529 = vadd.f32 %v521, %v527
        %v530 = vmax.f32 %v529, 0.0
        %v532 = vperm.slane %v437, 0
        %v533 = vperm.slane %v437, 4
        %536 = vrot.lane.b32.xlu0 %v532, 17
        %v537 = vpop.permute.xlu0 %536
        %538 = vrot.lane.b32.xlu0 %v533, 17
        %v539 = vpop.permute.xlu0 %538
        %vm540 = vcmp.lt.s32.totalorder %v337, 17
        %v541 = vsel %vm540, %v537, %v539
        %v542 = vsel %vm540, %v539, %v537
        %v543 = vsel %vm371, %v542, 0.0
        %v544 = vsel %vm372, %v541, 0.0
        %s545 = sld [smem:[#allocation11]]
        %v546 = vstv %s545
        %v547 = vmul.f32 %v546, %v543
        %v548 = vmul.f32 %v546, %v544
        %v551 = vrot.slane %v548, 4
        %vm552 = vcmask 1043456
        %v553 = vsel %vm552, %v547, %v551
        %v555 = vadd.f32 %v335, %v553
        %s556 = sld [smem:[#allocation11 + $0x24]]
        %v557 = vstv %s556
        %v558 = vmul.f32 %v557, %v543
        %v559 = vmul.f32 %v557, %v544
        %v562 = vrot.slane %v559, 4
        %v563 = vsel %vm552, %v558, %v562
        %v564 = vrot.slane %v563, 7
        %v566 = vadd.f32 %v335, %v564
        %s567 = sld [smem:[#allocation11 + $0x48]]
        %v568 = vstv %s567
        %v569 = vmul.f32 %v568, %v543
        %v570 = vmul.f32 %v568, %v544
        %v573 = vrot.slane %v570, 4
        %v574 = vsel %vm552, %v569, %v573
        %v575 = vrot.slane %v574, 6
        %v577 = vadd.f32 %v335, %v575
        %s578 = sld [smem:[#allocation11 + $0x6c]]
        %v579 = vstv %s578
        %v580 = vmul.f32 %v579, %v543
        %v581 = vmul.f32 %v579, %v544
        %v584 = vrot.slane %v581, 4
        %v585 = vsel %vm552, %v580, %v584
        %v586 = vrot.slane %v585, 5
        %v588 = vadd.f32 %v335, %v586
        %589 = vrot.lane.b32.xlu0 %v532, 16
        %v590 = vpop.permute.xlu0 %589
        %591 = vrot.lane.b32.xlu0 %v533, 16
        %v592 = vpop.permute.xlu0 %591
        %vm593 = vcmp.lt.s32.totalorder %v337, 16
        %v594 = vsel %vm593, %v590, %v592
        %v595 = vsel %vm593, %v592, %v590
        %v596 = vsel %vm367, %v595, 0.0
        %v597 = vsel %vm368, %v594, 0.0
        %s598 = sld [smem:[#allocation11 + $0x1]]
        %v599 = vstv %s598
        %v600 = vmul.f32 %v599, %v596
        %v601 = vmul.f32 %v599, %v597
        %v604 = vrot.slane %v601, 4
        %v605 = vsel %vm552, %v600, %v604
        %v607 = vadd.f32 %v555, %v605
        %s608 = sld [smem:[#allocation11 + $0x25]]
        %v609 = vstv %s608
        %v610 = vmul.f32 %v609, %v596
        %v611 = vmul.f32 %v609, %v597
        %v614 = vrot.slane %v611, 4
        %v615 = vsel %vm552, %v610, %v614
        %v616 = vrot.slane %v615, 7
        %v618 = vadd.f32 %v566, %v616
        %s619 = sld [smem:[#allocation11 + $0x49]]
        %v620 = vstv %s619
        %v621 = vmul.f32 %v620, %v596
        %v622 = vmul.f32 %v620, %v597
        %v625 = vrot.slane %v622, 4
        %v626 = vsel %vm552, %v621, %v625
        %v627 = vrot.slane %v626, 6
        %v629 = vadd.f32 %v577, %v627
        %s630 = sld [smem:[#allocation11 + $0x6d]]
        %v631 = vstv %s630
        %v632 = vmul.f32 %v631, %v596
        %v633 = vmul.f32 %v631, %v597
        %v636 = vrot.slane %v633, 4
        %v637 = vsel %vm552, %v632, %v636
        %v638 = vrot.slane %v637, 5
        %v640 = vadd.f32 %v588, %v638
        %641 = vrot.lane.b32.xlu0 %v532, 15
        %v642 = vpop.permute.xlu0 %641
        %643 = vrot.lane.b32.xlu0 %v533, 15
        %v644 = vpop.permute.xlu0 %643
        %vm645 = vcmp.lt.s32.totalorder %v337, 15
        %v646 = vsel %vm645, %v642, %v644
        %v647 = vsel %vm645, %v644, %v642
        %v648 = vsel %vm373, %v647, 0.0
        %v649 = vsel %vm374, %v646, 0.0
        %s650 = sld [smem:[#allocation11 + $0x2]]
        %v651 = vstv %s650
        %v652 = vmul.f32 %v651, %v648
        %v653 = vmul.f32 %v651, %v649
        %v656 = vrot.slane %v653, 4
        %v657 = vsel %vm552, %v652, %v656
        %v659 = vadd.f32 %v607, %v657
        %s660 = sld [smem:[#allocation11 + $0x26]]
        %v661 = vstv %s660
        %v662 = vmul.f32 %v661, %v648
        %v663 = vmul.f32 %v661, %v649
        %v666 = vrot.slane %v663, 4
        %v667 = vsel %vm552, %v662, %v666
        %v668 = vrot.slane %v667, 7
        %v670 = vadd.f32 %v618, %v668
        %s671 = sld [smem:[#allocation11 + $0x4a]]
        %v672 = vstv %s671
        %v673 = vmul.f32 %v672, %v648
        %v674 = vmul.f32 %v672, %v649
        %v677 = vrot.slane %v674, 4
        %v678 = vsel %vm552, %v673, %v677
        %v679 = vrot.slane %v678, 6
        %v681 = vadd.f32 %v629, %v679
        %s682 = sld [smem:[#allocation11 + $0x6e]]
        %v683 = vstv %s682
        %v684 = vmul.f32 %v683, %v648
        %v685 = vmul.f32 %v683, %v649
        %v688 = vrot.slane %v685, 4
        %v689 = vsel %vm552, %v684, %v688
        %v690 = vrot.slane %v689, 5
        %v692 = vadd.f32 %v640, %v690
        %693 = vrot.lane.b32.xlu0 %v532, 1
        %v694 = vpop.permute.xlu0 %693
        %695 = vrot.lane.b32.xlu0 %v533, 1
        %v696 = vpop.permute.xlu0 %695
        %vm697 = vcmp.lt.s32.totalorder %v337, 1
        %v698 = vsel %vm697, %v694, %v696
        %v699 = vsel %vm697, %v696, %v694
        %v700 = vsel %vm363, %v699, 0.0
        %v701 = vsel %vm364, %v698, 0.0
        %s702 = sld [smem:[#allocation11 + $0x3]]
        %v703 = vstv %s702
        %v704 = vmul.f32 %v703, %v700
        %v705 = vmul.f32 %v703, %v701
        %v708 = vrot.slane %v705, 4
        %v709 = vsel %vm552, %v704, %v708
        %v711 = vadd.f32 %v659, %v709
        %s712 = sld [smem:[#allocation11 + $0x27]]
        %v713 = vstv %s712
        %v714 = vmul.f32 %v713, %v700
        %v715 = vmul.f32 %v713, %v701
        %v718 = vrot.slane %v715, 4
        %v719 = vsel %vm552, %v714, %v718
        %v720 = vrot.slane %v719, 7
        %v722 = vadd.f32 %v670, %v720
        %s723 = sld [smem:[#allocation11 + $0x4b]]
        %v724 = vstv %s723
        %v725 = vmul.f32 %v724, %v700
        %v726 = vmul.f32 %v724, %v701
        %v729 = vrot.slane %v726, 4
        %v730 = vsel %vm552, %v725, %v729
        %v731 = vrot.slane %v730, 6
        %v733 = vadd.f32 %v681, %v731
        %s734 = sld [smem:[#allocation11 + $0x6f]]
        %v735 = vstv %s734
        %v736 = vmul.f32 %v735, %v700
        %v737 = vmul.f32 %v735, %v701
        %v740 = vrot.slane %v737, 4
        %v741 = vsel %vm552, %v736, %v740
        %v742 = vrot.slane %v741, 5
        %v744 = vadd.f32 %v692, %v742
        %s745 = sld [smem:[#allocation11 + $0x4]]
        %v746 = vstv %s745
        %v747 = vmul.f32 %v746, %v437
        %v748 = vadd.f32 %v711, %v747
        %s749 = sld [smem:[#allocation11 + $0x28]]
        %v750 = vstv %s749
        %v751 = vmul.f32 %v750, %v437
        %v753 = vrot.slane %v751, 7
        %v755 = vadd.f32 %v722, %v753
        %s756 = sld [smem:[#allocation11 + $0x4c]]
        %v757 = vstv %s756
        %v758 = vmul.f32 %v757, %v437
        %v760 = vrot.slane %v758, 6
        %v762 = vadd.f32 %v733, %v760
        %s763 = sld [smem:[#allocation11 + $0x70]]
        %v764 = vstv %s763
        %v765 = vmul.f32 %v764, %v437
        %v767 = vrot.slane %v765, 5
        %v769 = vadd.f32 %v744, %v767
        %770 = vrot.lane.b32.xlu0 %v532, 127
        %v771 = vpop.permute.xlu0 %770
        %772 = vrot.lane.b32.xlu0 %v533, 127
        %v773 = vpop.permute.xlu0 %772
        %vm774 = vcmp.lt.s32.totalorder %v337, 127
        %v775 = vsel %vm774, %v771, %v773
        %v776 = vsel %vm774, %v773, %v771
        %v777 = vsel %vm365, %v775, 0.0
        %v778 = vsel %vm366, %v776, 0.0
        %s779 = sld [smem:[#allocation11 + $0x5]]
        %v780 = vstv %s779
        %v781 = vmul.f32 %v780, %v777
        %v782 = vmul.f32 %v780, %v778
        %v785 = vrot.slane %v782, 4
        %v786 = vsel %vm552, %v781, %v785
        %v788 = vadd.f32 %v748, %v786
        %s789 = sld [smem:[#allocation11 + $0x29]]
        %v790 = vstv %s789
        %v791 = vmul.f32 %v790, %v777
        %v792 = vmul.f32 %v790, %v778
        %v795 = vrot.slane %v792, 4
        %v796 = vsel %vm552, %v791, %v795
        %v797 = vrot.slane %v796, 7
        %v799 = vadd.f32 %v755, %v797
        %s800 = sld [smem:[#allocation11 + $0x4d]]
        %v801 = vstv %s800
        %v802 = vmul.f32 %v801, %v777
        %v803 = vmul.f32 %v801, %v778
        %v806 = vrot.slane %v803, 4
        %v807 = vsel %vm552, %v802, %v806
        %v808 = vrot.slane %v807, 6
        %v810 = vadd.f32 %v762, %v808
        %s811 = sld [smem:[#allocation11 + $0x71]]
        %v812 = vstv %s811
        %v813 = vmul.f32 %v812, %v777
        %v814 = vmul.f32 %v812, %v778
        %v817 = vrot.slane %v814, 4
        %v818 = vsel %vm552, %v813, %v817
        %v819 = vrot.slane %v818, 5
        %v821 = vadd.f32 %v769, %v819
        %822 = vrot.lane.b32.xlu0 %v532, 113
        %v823 = vpop.permute.xlu0 %822
        %824 = vrot.lane.b32.xlu0 %v533, 113
        %v825 = vpop.permute.xlu0 %824
        %vm826 = vcmp.lt.s32.totalorder %v337, 113
        %v827 = vsel %vm826, %v823, %v825
        %v828 = vsel %vm826, %v825, %v823
        %v829 = vsel %vm375, %v827, 0.0
        %v830 = vsel %vm376, %v828, 0.0
        %s831 = sld [smem:[#allocation11 + $0x6]]
        %v832 = vstv %s831
        %v833 = vmul.f32 %v832, %v829
        %v834 = vmul.f32 %v832, %v830
        %v837 = vrot.slane %v834, 4
        %v838 = vsel %vm552, %v833, %v837
        %v840 = vadd.f32 %v788, %v838
        %s841 = sld [smem:[#allocation11 + $0x2a]]
        %v842 = vstv %s841
        %v843 = vmul.f32 %v842, %v829
        %v844 = vmul.f32 %v842, %v830
        %v847 = vrot.slane %v844, 4
        %v848 = vsel %vm552, %v843, %v847
        %v849 = vrot.slane %v848, 7
        %v851 = vadd.f32 %v799, %v849
        %s852 = sld [smem:[#allocation11 + $0x4e]]
        %v853 = vstv %s852
        %v854 = vmul.f32 %v853, %v829
        %v855 = vmul.f32 %v853, %v830
        %v858 = vrot.slane %v855, 4
        %v859 = vsel %vm552, %v854, %v858
        %v860 = vrot.slane %v859, 6
        %v862 = vadd.f32 %v810, %v860
        %s863 = sld [smem:[#allocation11 + $0x72]]
        %v864 = vstv %s863
        %v865 = vmul.f32 %v864, %v829
        %v866 = vmul.f32 %v864, %v830
        %v869 = vrot.slane %v866, 4
        %v870 = vsel %vm552, %v865, %v869
        %v871 = vrot.slane %v870, 5
        %v873 = vadd.f32 %v821, %v871
        %874 = vrot.lane.b32.xlu0 %v532, 112
        %v875 = vpop.permute.xlu0 %874
        %876 = vrot.lane.b32.xlu0 %v533, 112
        %v877 = vpop.permute.xlu0 %876
        %vm878 = vcmp.lt.s32.totalorder %v337, 112
        %v879 = vsel %vm878, %v875, %v877
        %v880 = vsel %vm878, %v877, %v875
        %v881 = vsel %vm369, %v879, 0.0
        %v882 = vsel %vm370, %v880, 0.0
        %s883 = sld [smem:[#allocation11 + $0x7]]
        %v884 = vstv %s883
        %v885 = vmul.f32 %v884, %v881
        %v886 = vmul.f32 %v884, %v882
        %v889 = vrot.slane %v886, 4
        %v890 = vsel %vm552, %v885, %v889
        %v892 = vadd.f32 %v840, %v890
        %s893 = sld [smem:[#allocation11 + $0x2b]]
        %v894 = vstv %s893
        %v895 = vmul.f32 %v894, %v881
        %v896 = vmul.f32 %v894, %v882
        %v899 = vrot.slane %v896, 4
        %v900 = vsel %vm552, %v895, %v899
        %v901 = vrot.slane %v900, 7
        %v903 = vadd.f32 %v851, %v901
        %s904 = sld [smem:[#allocation11 + $0x4f]]
        %v905 = vstv %s904
        %v906 = vmul.f32 %v905, %v881
        %v907 = vmul.f32 %v905, %v882
        %v910 = vrot.slane %v907, 4
        %v911 = vsel %vm552, %v906, %v910
        %v912 = vrot.slane %v911, 6
        %v914 = vadd.f32 %v862, %v912
        %s915 = sld [smem:[#allocation11 + $0x73]]
        %v916 = vstv %s915
        %v917 = vmul.f32 %v916, %v881
        %v918 = vmul.f32 %v916, %v882
        %v921 = vrot.slane %v918, 4
        %v922 = vsel %vm552, %v917, %v921
        %v923 = vrot.slane %v922, 5
        %v925 = vadd.f32 %v873, %v923
        %926 = vrot.lane.b32.xlu0 %v532, 111
        %v927 = vpop.permute.xlu0 %926
        %928 = vrot.lane.b32.xlu0 %v533, 111
        %v929 = vpop.permute.xlu0 %928
        %vm930 = vcmp.lt.s32.totalorder %v337, 111
        %v931 = vsel %vm930, %v927, %v929
        %v932 = vsel %vm930, %v929, %v927
        %v933 = vsel %vm377, %v931, 0.0
        %v934 = vsel %vm378, %v932, 0.0
        %s935 = sld [smem:[#allocation11 + $0x8]]
        %v936 = vstv %s935
        %v937 = vmul.f32 %v936, %v933
        %v938 = vmul.f32 %v936, %v934
        %v941 = vrot.slane %v938, 4
        %v942 = vsel %vm552, %v937, %v941
        %v944 = vadd.f32 %v892, %v942
        %s945 = sld [smem:[#allocation11 + $0x2c]]
        %v946 = vstv %s945
        %v947 = vmul.f32 %v946, %v933
        %v948 = vmul.f32 %v946, %v934
        %v951 = vrot.slane %v948, 4
        %v952 = vsel %vm552, %v947, %v951
        %v953 = vrot.slane %v952, 7
        %v955 = vadd.f32 %v903, %v953
        %s956 = sld [smem:[#allocation11 + $0x50]]
        %v957 = vstv %s956
        %v958 = vmul.f32 %v957, %v933
        %v959 = vmul.f32 %v957, %v934
        %v962 = vrot.slane %v959, 4
        %v963 = vsel %vm552, %v958, %v962
        %v964 = vrot.slane %v963, 6
        %v966 = vadd.f32 %v914, %v964
        %s967 = sld [smem:[#allocation11 + $0x74]]
        %v968 = vstv %s967
        %v969 = vmul.f32 %v968, %v933
        %v970 = vmul.f32 %v968, %v934
        %v973 = vrot.slane %v970, 4
        %v974 = vsel %vm552, %v969, %v973
        %v975 = vrot.slane %v974, 5
        %v977 = vadd.f32 %v925, %v975
        %v979 = vperm.slane %v468, 0
        %v980 = vperm.slane %v468, 4
        %983 = vrot.lane.b32.xlu0 %v979, 17
        %v984 = vpop.permute.xlu0 %983
        %985 = vrot.lane.b32.xlu0 %v980, 17
        %v986 = vpop.permute.xlu0 %985
        %v987 = vsel %vm540, %v984, %v986
        %v988 = vsel %vm540, %v986, %v984
        %v989 = vsel %vm371, %v988, 0.0
        %v990 = vsel %vm372, %v987, 0.0
        %s991 = sld [smem:[#allocation11 + $0x9]]
        %v992 = vstv %s991
        %v993 = vmul.f32 %v992, %v989
        %v994 = vmul.f32 %v992, %v990
        %v997 = vrot.slane %v994, 4
        %v998 = vsel %vm552, %v993, %v997
        %v1000 = vadd.f32 %v944, %v998
        %s1001 = sld [smem:[#allocation11 + $0x2d]]
        %v1002 = vstv %s1001
        %v1003 = vmul.f32 %v1002, %v989
        %v1004 = vmul.f32 %v1002, %v990
        %v1007 = vrot.slane %v1004, 4
        %v1008 = vsel %vm552, %v1003, %v1007
        %v1009 = vrot.slane %v1008, 7
        %v1011 = vadd.f32 %v955, %v1009
        %s1012 = sld [smem:[#allocation11 + $0x51]]
        %v1013 = vstv %s1012
        %v1014 = vmul.f32 %v1013, %v989
        %v1015 = vmul.f32 %v1013, %v990
        %v1018 = vrot.slane %v1015, 4
        %v1019 = vsel %vm552, %v1014, %v1018
        %v1020 = vrot.slane %v1019, 6
        %v1022 = vadd.f32 %v966, %v1020
        %s1023 = sld [smem:[#allocation11 + $0x75]]
        %v1024 = vstv %s1023
        %v1025 = vmul.f32 %v1024, %v989
        %v1026 = vmul.f32 %v1024, %v990
        %v1029 = vrot.slane %v1026, 4
        %v1030 = vsel %vm552, %v1025, %v1029
        %v1031 = vrot.slane %v1030, 5
        %v1033 = vadd.f32 %v977, %v1031
        %1034 = vrot.lane.b32.xlu0 %v979, 16
        %v1035 = vpop.permute.xlu0 %1034
        %1036 = vrot.lane.b32.xlu0 %v980, 16
        %v1037 = vpop.permute.xlu0 %1036
        %v1038 = vsel %vm593, %v1035, %v1037
        %v1039 = vsel %vm593, %v1037, %v1035
        %v1040 = vsel %vm367, %v1039, 0.0
        %v1041 = vsel %vm368, %v1038, 0.0
        %s1042 = sld [smem:[#allocation11 + $0xa]]
        %v1043 = vstv %s1042
        %v1044 = vmul.f32 %v1043, %v1040
        %v1045 = vmul.f32 %v1043, %v1041
        %v1048 = vrot.slane %v1045, 4
        %v1049 = vsel %vm552, %v1044, %v1048
        %v1051 = vadd.f32 %v1000, %v1049
        %s1052 = sld [smem:[#allocation11 + $0x2e]]
        %v1053 = vstv %s1052
        %v1054 = vmul.f32 %v1053, %v1040
        %v1055 = vmul.f32 %v1053, %v1041
        %v1058 = vrot.slane %v1055, 4
        %v1059 = vsel %vm552, %v1054, %v1058
        %v1060 = vrot.slane %v1059, 7
        %v1062 = vadd.f32 %v1011, %v1060
        %s1063 = sld [smem:[#allocation11 + $0x52]]
        %v1064 = vstv %s1063
        %v1065 = vmul.f32 %v1064, %v1040
        %v1066 = vmul.f32 %v1064, %v1041
        %v1069 = vrot.slane %v1066, 4
        %v1070 = vsel %vm552, %v1065, %v1069
        %v1071 = vrot.slane %v1070, 6
        %v1073 = vadd.f32 %v1022, %v1071
        %s1074 = sld [smem:[#allocation11 + $0x76]]
        %v1075 = vstv %s1074
        %v1076 = vmul.f32 %v1075, %v1040
        %v1077 = vmul.f32 %v1075, %v1041
        %v1080 = vrot.slane %v1077, 4
        %v1081 = vsel %vm552, %v1076, %v1080
        %v1082 = vrot.slane %v1081, 5
        %v1084 = vadd.f32 %v1033, %v1082
        %1085 = vrot.lane.b32.xlu0 %v979, 15
        %v1086 = vpop.permute.xlu0 %1085
        %1087 = vrot.lane.b32.xlu0 %v980, 15
        %v1088 = vpop.permute.xlu0 %1087
        %v1089 = vsel %vm645, %v1086, %v1088
        %v1090 = vsel %vm645, %v1088, %v1086
        %v1091 = vsel %vm373, %v1090, 0.0
        %v1092 = vsel %vm374, %v1089, 0.0
        %s1093 = sld [smem:[#allocation11 + $0xb]]
        %v1094 = vstv %s1093
        %v1095 = vmul.f32 %v1094, %v1091
        %v1096 = vmul.f32 %v1094, %v1092
        %v1099 = vrot.slane %v1096, 4
        %v1100 = vsel %vm552, %v1095, %v1099
        %v1102 = vadd.f32 %v1051, %v1100
        %s1103 = sld [smem:[#allocation11 + $0x2f]]
        %v1104 = vstv %s1103
        %v1105 = vmul.f32 %v1104, %v1091
        %v1106 = vmul.f32 %v1104, %v1092
        %v1109 = vrot.slane %v1106, 4
        %v1110 = vsel %vm552, %v1105, %v1109
        %v1111 = vrot.slane %v1110, 7
        %v1113 = vadd.f32 %v1062, %v1111
        %s1114 = sld [smem:[#allocation11 + $0x53]]
        %v1115 = vstv %s1114
        %v1116 = vmul.f32 %v1115, %v1091
        %v1117 = vmul.f32 %v1115, %v1092
        %v1120 = vrot.slane %v1117, 4
        %v1121 = vsel %vm552, %v1116, %v1120
        %v1122 = vrot.slane %v1121, 6
        %v1124 = vadd.f32 %v1073, %v1122
        %s1125 = sld [smem:[#allocation11 + $0x77]]
        %v1126 = vstv %s1125
        %v1127 = vmul.f32 %v1126, %v1091
        %v1128 = vmul.f32 %v1126, %v1092
        %v1131 = vrot.slane %v1128, 4
        %v1132 = vsel %vm552, %v1127, %v1131
        %v1133 = vrot.slane %v1132, 5
        %v1135 = vadd.f32 %v1084, %v1133
        %1136 = vrot.lane.b32.xlu0 %v979, 1
        %v1137 = vpop.permute.xlu0 %1136
        %1138 = vrot.lane.b32.xlu0 %v980, 1
        %v1139 = vpop.permute.xlu0 %1138
        %v1140 = vsel %vm697, %v1137, %v1139
        %v1141 = vsel %vm697, %v1139, %v1137
        %v1142 = vsel %vm363, %v1141, 0.0
        %v1143 = vsel %vm364, %v1140, 0.0
        %s1144 = sld [smem:[#allocation11 + $0xc]]
        %v1145 = vstv %s1144
        %v1146 = vmul.f32 %v1145, %v1142
        %v1147 = vmul.f32 %v1145, %v1143
        %v1150 = vrot.slane %v1147, 4
        %v1151 = vsel %vm552, %v1146, %v1150
        %v1153 = vadd.f32 %v1102, %v1151
        %s1154 = sld [smem:[#allocation11 + $0x30]]
        %v1155 = vstv %s1154
        %v1156 = vmul.f32 %v1155, %v1142
        %v1157 = vmul.f32 %v1155, %v1143
        %v1160 = vrot.slane %v1157, 4
        %v1161 = vsel %vm552, %v1156, %v1160
        %v1162 = vrot.slane %v1161, 7
        %v1164 = vadd.f32 %v1113, %v1162
        %s1165 = sld [smem:[#allocation11 + $0x54]]
        %v1166 = vstv %s1165
        %v1167 = vmul.f32 %v1166, %v1142
        %v1168 = vmul.f32 %v1166, %v1143
        %v1171 = vrot.slane %v1168, 4
        %v1172 = vsel %vm552, %v1167, %v1171
        %v1173 = vrot.slane %v1172, 6
        %v1175 = vadd.f32 %v1124, %v1173
        %s1176 = sld [smem:[#allocation11 + $0x78]]
        %v1177 = vstv %s1176
        %v1178 = vmul.f32 %v1177, %v1142
        %v1179 = vmul.f32 %v1177, %v1143
        %v1182 = vrot.slane %v1179, 4
        %v1183 = vsel %vm552, %v1178, %v1182
        %v1184 = vrot.slane %v1183, 5
        %v1186 = vadd.f32 %v1135, %v1184
        %s1187 = sld [smem:[#allocation11 + $0xd]]
        %v1188 = vstv %s1187
        %v1189 = vmul.f32 %v1188, %v468
        %v1190 = vadd.f32 %v1153, %v1189
        %s1191 = sld [smem:[#allocation11 + $0x31]]
        %v1192 = vstv %s1191
        %v1193 = vmul.f32 %v1192, %v468
        %v1195 = vrot.slane %v1193, 7
        %v1197 = vadd.f32 %v1164, %v1195
        %s1198 = sld [smem:[#allocation11 + $0x55]]
        %v1199 = vstv %s1198
        %v1200 = vmul.f32 %v1199, %v468
        %v1202 = vrot.slane %v1200, 6
        %v1204 = vadd.f32 %v1175, %v1202
        %s1205 = sld [smem:[#allocation11 + $0x79]]
        %v1206 = vstv %s1205
        %v1207 = vmul.f32 %v1206, %v468
        %v1209 = vrot.slane %v1207, 5
        %v1211 = vadd.f32 %v1186, %v1209
        %1212 = vrot.lane.b32.xlu0 %v979, 127
        %v1213 = vpop.permute.xlu0 %1212
        %1214 = vrot.lane.b32.xlu0 %v980, 127
        %v1215 = vpop.permute.xlu0 %1214
        %v1216 = vsel %vm774, %v1213, %v1215
        %v1217 = vsel %vm774, %v1215, %v1213
        %v1218 = vsel %vm365, %v1216, 0.0
        %v1219 = vsel %vm366, %v1217, 0.0
        %s1220 = sld [smem:[#allocation11 + $0xe]]
        %v1221 = vstv %s1220
        %v1222 = vmul.f32 %v1221, %v1218
        %v1223 = vmul.f32 %v1221, %v1219
        %v1226 = vrot.slane %v1223, 4
        %v1227 = vsel %vm552, %v1222, %v1226
        %v1229 = vadd.f32 %v1190, %v1227
        %s1230 = sld [smem:[#allocation11 + $0x32]]
        %v1231 = vstv %s1230
        %v1232 = vmul.f32 %v1231, %v1218
        %v1233 = vmul.f32 %v1231, %v1219
        %v1236 = vrot.slane %v1233, 4
        %v1237 = vsel %vm552, %v1232, %v1236
        %v1238 = vrot.slane %v1237, 7
        %v1240 = vadd.f32 %v1197, %v1238
        %s1241 = sld [smem:[#allocation11 + $0x56]]
        %v1242 = vstv %s1241
        %v1243 = vmul.f32 %v1242, %v1218
        %v1244 = vmul.f32 %v1242, %v1219
        %v1247 = vrot.slane %v1244, 4
        %v1248 = vsel %vm552, %v1243, %v1247
        %v1249 = vrot.slane %v1248, 6
        %v1251 = vadd.f32 %v1204, %v1249
        %s1252 = sld [smem:[#allocation11 + $0x7a]]
        %v1253 = vstv %s1252
        %v1254 = vmul.f32 %v1253, %v1218
        %v1255 = vmul.f32 %v1253, %v1219
        %v1258 = vrot.slane %v1255, 4
        %v1259 = vsel %vm552, %v1254, %v1258
        %v1260 = vrot.slane %v1259, 5
        %v1262 = vadd.f32 %v1211, %v1260
        %1263 = vrot.lane.b32.xlu0 %v979, 113
        %v1264 = vpop.permute.xlu0 %1263
        %1265 = vrot.lane.b32.xlu0 %v980, 113
        %v1266 = vpop.permute.xlu0 %1265
        %v1267 = vsel %vm826, %v1264, %v1266
        %v1268 = vsel %vm826, %v1266, %v1264
        %v1269 = vsel %vm375, %v1267, 0.0
        %v1270 = vsel %vm376, %v1268, 0.0
        %s1271 = sld [smem:[#allocation11 + $0xf]]
        %v1272 = vstv %s1271
        %v1273 = vmul.f32 %v1272, %v1269
        %v1274 = vmul.f32 %v1272, %v1270
        %v1277 = vrot.slane %v1274, 4
        %v1278 = vsel %vm552, %v1273, %v1277
        %v1280 = vadd.f32 %v1229, %v1278
        %s1281 = sld [smem:[#allocation11 + $0x33]]
        %v1282 = vstv %s1281
        %v1283 = vmul.f32 %v1282, %v1269
        %v1284 = vmul.f32 %v1282, %v1270
        %v1287 = vrot.slane %v1284, 4
        %v1288 = vsel %vm552, %v1283, %v1287
        %v1289 = vrot.slane %v1288, 7
        %v1291 = vadd.f32 %v1240, %v1289
        %s1292 = sld [smem:[#allocation11 + $0x57]]
        %v1293 = vstv %s1292
        %v1294 = vmul.f32 %v1293, %v1269
        %v1295 = vmul.f32 %v1293, %v1270
        %v1298 = vrot.slane %v1295, 4
        %v1299 = vsel %vm552, %v1294, %v1298
        %v1300 = vrot.slane %v1299, 6
        %v1302 = vadd.f32 %v1251, %v1300
        %s1303 = sld [smem:[#allocation11 + $0x7b]]
        %v1304 = vstv %s1303
        %v1305 = vmul.f32 %v1304, %v1269
        %v1306 = vmul.f32 %v1304, %v1270
        %v1309 = vrot.slane %v1306, 4
        %v1310 = vsel %vm552, %v1305, %v1309
        %v1311 = vrot.slane %v1310, 5
        %v1313 = vadd.f32 %v1262, %v1311
        %1314 = vrot.lane.b32.xlu0 %v979, 112
        %v1315 = vpop.permute.xlu0 %1314
        %1316 = vrot.lane.b32.xlu0 %v980, 112
        %v1317 = vpop.permute.xlu0 %1316
        %v1318 = vsel %vm878, %v1315, %v1317
        %v1319 = vsel %vm878, %v1317, %v1315
        %v1320 = vsel %vm369, %v1318, 0.0
        %v1321 = vsel %vm370, %v1319, 0.0
        %s1322 = sld [smem:[#allocation11 + $0x10]]
        %v1323 = vstv %s1322
        %v1324 = vmul.f32 %v1323, %v1320
        %v1325 = vmul.f32 %v1323, %v1321
        %v1328 = vrot.slane %v1325, 4
        %v1329 = vsel %vm552, %v1324, %v1328
        %v1331 = vadd.f32 %v1280, %v1329
        %s1332 = sld [smem:[#allocation11 + $0x34]]
        %v1333 = vstv %s1332
        %v1334 = vmul.f32 %v1333, %v1320
        %v1335 = vmul.f32 %v1333, %v1321
        %v1338 = vrot.slane %v1335, 4
        %v1339 = vsel %vm552, %v1334, %v1338
        %v1340 = vrot.slane %v1339, 7
        %v1342 = vadd.f32 %v1291, %v1340
        %s1343 = sld [smem:[#allocation11 + $0x58]]
        %v1344 = vstv %s1343
        %v1345 = vmul.f32 %v1344, %v1320
        %v1346 = vmul.f32 %v1344, %v1321
        %v1349 = vrot.slane %v1346, 4
        %v1350 = vsel %vm552, %v1345, %v1349
        %v1351 = vrot.slane %v1350, 6
        %v1353 = vadd.f32 %v1302, %v1351
        %s1354 = sld [smem:[#allocation11 + $0x7c]]
        %v1355 = vstv %s1354
        %v1356 = vmul.f32 %v1355, %v1320
        %v1357 = vmul.f32 %v1355, %v1321
        %v1360 = vrot.slane %v1357, 4
        %v1361 = vsel %vm552, %v1356, %v1360
        %v1362 = vrot.slane %v1361, 5
        %v1364 = vadd.f32 %v1313, %v1362
        %1365 = vrot.lane.b32.xlu0 %v979, 111
        %v1366 = vpop.permute.xlu0 %1365
        %1367 = vrot.lane.b32.xlu0 %v980, 111
        %v1368 = vpop.permute.xlu0 %1367
        %v1369 = vsel %vm930, %v1366, %v1368
        %v1370 = vsel %vm930, %v1368, %v1366
        %v1371 = vsel %vm377, %v1369, 0.0
        %v1372 = vsel %vm378, %v1370, 0.0
        %s1373 = sld [smem:[#allocation11 + $0x11]]
        %v1374 = vstv %s1373
        %v1375 = vmul.f32 %v1374, %v1371
        %v1376 = vmul.f32 %v1374, %v1372
        %v1379 = vrot.slane %v1376, 4
        %v1380 = vsel %vm552, %v1375, %v1379
        %v1382 = vadd.f32 %v1331, %v1380
        %s1383 = sld [smem:[#allocation11 + $0x35]]
        %v1384 = vstv %s1383
        %v1385 = vmul.f32 %v1384, %v1371
        %v1386 = vmul.f32 %v1384, %v1372
        %v1389 = vrot.slane %v1386, 4
        %v1390 = vsel %vm552, %v1385, %v1389
        %v1391 = vrot.slane %v1390, 7
        %v1393 = vadd.f32 %v1342, %v1391
        %s1394 = sld [smem:[#allocation11 + $0x59]]
        %v1395 = vstv %s1394
        %v1396 = vmul.f32 %v1395, %v1371
        %v1397 = vmul.f32 %v1395, %v1372
        %v1400 = vrot.slane %v1397, 4
        %v1401 = vsel %vm552, %v1396, %v1400
        %v1402 = vrot.slane %v1401, 6
        %v1404 = vadd.f32 %v1353, %v1402
        %s1405 = sld [smem:[#allocation11 + $0x7d]]
        %v1406 = vstv %s1405
        %v1407 = vmul.f32 %v1406, %v1371
        %v1408 = vmul.f32 %v1406, %v1372
        %v1411 = vrot.slane %v1408, 4
        %v1412 = vsel %vm552, %v1407, %v1411
        %v1413 = vrot.slane %v1412, 5
        %v1415 = vadd.f32 %v1364, %v1413
        %v1417 = vperm.slane %v499, 0
        %v1418 = vperm.slane %v499, 4
        %1421 = vrot.lane.b32.xlu0 %v1417, 17
        %v1422 = vpop.permute.xlu0 %1421
        %1423 = vrot.lane.b32.xlu0 %v1418, 17
        %v1424 = vpop.permute.xlu0 %1423
        %v1425 = vsel %vm540, %v1422, %v1424
        %v1426 = vsel %vm540, %v1424, %v1422
        %v1427 = vsel %vm371, %v1426, 0.0
        %v1428 = vsel %vm372, %v1425, 0.0
        %s1429 = sld [smem:[#allocation11 + $0x12]]
        %v1430 = vstv %s1429
        %v1431 = vmul.f32 %v1430, %v1427
        %v1432 = vmul.f32 %v1430, %v1428
        %v1435 = vrot.slane %v1432, 4
        %v1436 = vsel %vm552, %v1431, %v1435
        %v1438 = vadd.f32 %v1382, %v1436
        %s1439 = sld [smem:[#allocation11 + $0x36]]
        %v1440 = vstv %s1439
        %v1441 = vmul.f32 %v1440, %v1427
        %v1442 = vmul.f32 %v1440, %v1428
        %v1445 = vrot.slane %v1442, 4
        %v1446 = vsel %vm552, %v1441, %v1445
        %v1447 = vrot.slane %v1446, 7
        %v1449 = vadd.f32 %v1393, %v1447
        %s1450 = sld [smem:[#allocation11 + $0x5a]]
        %v1451 = vstv %s1450
        %v1452 = vmul.f32 %v1451, %v1427
        %v1453 = vmul.f32 %v1451, %v1428
        %v1456 = vrot.slane %v1453, 4
        %v1457 = vsel %vm552, %v1452, %v1456
        %v1458 = vrot.slane %v1457, 6
        %v1460 = vadd.f32 %v1404, %v1458
        %s1461 = sld [smem:[#allocation11 + $0x7e]]
        %v1462 = vstv %s1461
        %v1463 = vmul.f32 %v1462, %v1427
        %v1464 = vmul.f32 %v1462, %v1428
        %v1467 = vrot.slane %v1464, 4
        %v1468 = vsel %vm552, %v1463, %v1467
        %v1469 = vrot.slane %v1468, 5
        %v1471 = vadd.f32 %v1415, %v1469
        %1472 = vrot.lane.b32.xlu0 %v1417, 16
        %v1473 = vpop.permute.xlu0 %1472
        %1474 = vrot.lane.b32.xlu0 %v1418, 16
        %v1475 = vpop.permute.xlu0 %1474
        %v1476 = vsel %vm593, %v1473, %v1475
        %v1477 = vsel %vm593, %v1475, %v1473
        %v1478 = vsel %vm367, %v1477, 0.0
        %v1479 = vsel %vm368, %v1476, 0.0
        %s1480 = sld [smem:[#allocation11 + $0x13]]
        %v1481 = vstv %s1480
        %v1482 = vmul.f32 %v1481, %v1478
        %v1483 = vmul.f32 %v1481, %v1479
        %v1486 = vrot.slane %v1483, 4
        %v1487 = vsel %vm552, %v1482, %v1486
        %v1489 = vadd.f32 %v1438, %v1487
        %s1490 = sld [smem:[#allocation11 + $0x37]]
        %v1491 = vstv %s1490
        %v1492 = vmul.f32 %v1491, %v1478
        %v1493 = vmul.f32 %v1491, %v1479
        %v1496 = vrot.slane %v1493, 4
        %v1497 = vsel %vm552, %v1492, %v1496
        %v1498 = vrot.slane %v1497, 7
        %v1500 = vadd.f32 %v1449, %v1498
        %s1501 = sld [smem:[#allocation11 + $0x5b]]
        %v1502 = vstv %s1501
        %v1503 = vmul.f32 %v1502, %v1478
        %v1504 = vmul.f32 %v1502, %v1479
        %v1507 = vrot.slane %v1504, 4
        %v1508 = vsel %vm552, %v1503, %v1507
        %v1509 = vrot.slane %v1508, 6
        %v1511 = vadd.f32 %v1460, %v1509
        %s1512 = sld [smem:[#allocation11 + $0x7f]]
        %v1513 = vstv %s1512
        %v1514 = vmul.f32 %v1513, %v1478
        %v1515 = vmul.f32 %v1513, %v1479
        %v1518 = vrot.slane %v1515, 4
        %v1519 = vsel %vm552, %v1514, %v1518
        %v1520 = vrot.slane %v1519, 5
        %v1522 = vadd.f32 %v1471, %v1520
        %1523 = vrot.lane.b32.xlu0 %v1417, 15
        %v1524 = vpop.permute.xlu0 %1523
        %1525 = vrot.lane.b32.xlu0 %v1418, 15
        %v1526 = vpop.permute.xlu0 %1525
        %v1527 = vsel %vm645, %v1524, %v1526
        %v1528 = vsel %vm645, %v1526, %v1524
        %v1529 = vsel %vm373, %v1528, 0.0
        %v1530 = vsel %vm374, %v1527, 0.0
        %s1531 = sld [smem:[#allocation11 + $0x14]]
        %v1532 = vstv %s1531
        %v1533 = vmul.f32 %v1532, %v1529
        %v1534 = vmul.f32 %v1532, %v1530
        %v1537 = vrot.slane %v1534, 4
        %v1538 = vsel %vm552, %v1533, %v1537
        %v1540 = vadd.f32 %v1489, %v1538
        %s1541 = sld [smem:[#allocation11 + $0x38]]
        %v1542 = vstv %s1541
        %v1543 = vmul.f32 %v1542, %v1529
        %v1544 = vmul.f32 %v1542, %v1530
        %v1547 = vrot.slane %v1544, 4
        %v1548 = vsel %vm552, %v1543, %v1547
        %v1549 = vrot.slane %v1548, 7
        %v1551 = vadd.f32 %v1500, %v1549
        %s1552 = sld [smem:[#allocation11 + $0x5c]]
        %v1553 = vstv %s1552
        %v1554 = vmul.f32 %v1553, %v1529
        %v1555 = vmul.f32 %v1553, %v1530
        %v1558 = vrot.slane %v1555, 4
        %v1559 = vsel %vm552, %v1554, %v1558
        %v1560 = vrot.slane %v1559, 6
        %v1562 = vadd.f32 %v1511, %v1560
        %s1563 = sld [smem:[#allocation11 + $0x80]]
        %v1564 = vstv %s1563
        %v1565 = vmul.f32 %v1564, %v1529
        %v1566 = vmul.f32 %v1564, %v1530
        %v1569 = vrot.slane %v1566, 4
        %v1570 = vsel %vm552, %v1565, %v1569
        %v1571 = vrot.slane %v1570, 5
        %v1573 = vadd.f32 %v1522, %v1571
        %1574 = vrot.lane.b32.xlu0 %v1417, 1
        %v1575 = vpop.permute.xlu0 %1574
        %1576 = vrot.lane.b32.xlu0 %v1418, 1
        %v1577 = vpop.permute.xlu0 %1576
        %v1578 = vsel %vm697, %v1575, %v1577
        %v1579 = vsel %vm697, %v1577, %v1575
        %v1580 = vsel %vm363, %v1579, 0.0
        %v1581 = vsel %vm364, %v1578, 0.0
        %s1582 = sld [smem:[#allocation11 + $0x15]]
        %v1583 = vstv %s1582
        %v1584 = vmul.f32 %v1583, %v1580
        %v1585 = vmul.f32 %v1583, %v1581
        %v1588 = vrot.slane %v1585, 4
        %v1589 = vsel %vm552, %v1584, %v1588
        %v1591 = vadd.f32 %v1540, %v1589
        %s1592 = sld [smem:[#allocation11 + $0x39]]
        %v1593 = vstv %s1592
        %v1594 = vmul.f32 %v1593, %v1580
        %v1595 = vmul.f32 %v1593, %v1581
        %v1598 = vrot.slane %v1595, 4
        %v1599 = vsel %vm552, %v1594, %v1598
        %v1600 = vrot.slane %v1599, 7
        %v1602 = vadd.f32 %v1551, %v1600
        %s1603 = sld [smem:[#allocation11 + $0x5d]]
        %v1604 = vstv %s1603
        %v1605 = vmul.f32 %v1604, %v1580
        %v1606 = vmul.f32 %v1604, %v1581
        %v1609 = vrot.slane %v1606, 4
        %v1610 = vsel %vm552, %v1605, %v1609
        %v1611 = vrot.slane %v1610, 6
        %v1613 = vadd.f32 %v1562, %v1611
        %s1614 = sld [smem:[#allocation11 + $0x81]]
        %v1615 = vstv %s1614
        %v1616 = vmul.f32 %v1615, %v1580
        %v1617 = vmul.f32 %v1615, %v1581
        %v1620 = vrot.slane %v1617, 4
        %v1621 = vsel %vm552, %v1616, %v1620
        %v1622 = vrot.slane %v1621, 5
        %v1624 = vadd.f32 %v1573, %v1622
        %s1625 = sld [smem:[#allocation11 + $0x16]]
        %v1626 = vstv %s1625
        %v1627 = vmul.f32 %v1626, %v499
        %v1628 = vadd.f32 %v1591, %v1627
        %s1629 = sld [smem:[#allocation11 + $0x3a]]
        %v1630 = vstv %s1629
        %v1631 = vmul.f32 %v1630, %v499
        %v1633 = vrot.slane %v1631, 7
        %v1635 = vadd.f32 %v1602, %v1633
        %s1636 = sld [smem:[#allocation11 + $0x5e]]
        %v1637 = vstv %s1636
        %v1638 = vmul.f32 %v1637, %v499
        %v1640 = vrot.slane %v1638, 6
        %v1642 = vadd.f32 %v1613, %v1640
        %s1643 = sld [smem:[#allocation11 + $0x82]]
        %v1644 = vstv %s1643
        %v1645 = vmul.f32 %v1644, %v499
        %v1647 = vrot.slane %v1645, 5
        %v1649 = vadd.f32 %v1624, %v1647
        %1650 = vrot.lane.b32.xlu0 %v1417, 127
        %v1651 = vpop.permute.xlu0 %1650
        %1652 = vrot.lane.b32.xlu0 %v1418, 127
        %v1653 = vpop.permute.xlu0 %1652
        %v1654 = vsel %vm774, %v1651, %v1653
        %v1655 = vsel %vm774, %v1653, %v1651
        %v1656 = vsel %vm365, %v1654, 0.0
        %v1657 = vsel %vm366, %v1655, 0.0
        %s1658 = sld [smem:[#allocation11 + $0x17]]
        %v1659 = vstv %s1658
        %v1660 = vmul.f32 %v1659, %v1656
        %v1661 = vmul.f32 %v1659, %v1657
        %v1664 = vrot.slane %v1661, 4
        %v1665 = vsel %vm552, %v1660, %v1664
        %v1667 = vadd.f32 %v1628, %v1665
        %s1668 = sld [smem:[#allocation11 + $0x3b]]
        %v1669 = vstv %s1668
        %v1670 = vmul.f32 %v1669, %v1656
        %v1671 = vmul.f32 %v1669, %v1657
        %v1674 = vrot.slane %v1671, 4
        %v1675 = vsel %vm552, %v1670, %v1674
        %v1676 = vrot.slane %v1675, 7
        %v1678 = vadd.f32 %v1635, %v1676
        %s1679 = sld [smem:[#allocation11 + $0x5f]]
        %v1680 = vstv %s1679
        %v1681 = vmul.f32 %v1680, %v1656
        %v1682 = vmul.f32 %v1680, %v1657
        %v1685 = vrot.slane %v1682, 4
        %v1686 = vsel %vm552, %v1681, %v1685
        %v1687 = vrot.slane %v1686, 6
        %v1689 = vadd.f32 %v1642, %v1687
        %s1690 = sld [smem:[#allocation11 + $0x83]]
        %v1691 = vstv %s1690
        %v1692 = vmul.f32 %v1691, %v1656
        %v1693 = vmul.f32 %v1691, %v1657
        %v1696 = vrot.slane %v1693, 4
        %v1697 = vsel %vm552, %v1692, %v1696
        %v1698 = vrot.slane %v1697, 5
        %v1700 = vadd.f32 %v1649, %v1698
        %1701 = vrot.lane.b32.xlu0 %v1417, 113
        %v1702 = vpop.permute.xlu0 %1701
        %1703 = vrot.lane.b32.xlu0 %v1418, 113
        %v1704 = vpop.permute.xlu0 %1703
        %v1705 = vsel %vm826, %v1702, %v1704
        %v1706 = vsel %vm826, %v1704, %v1702
        %v1707 = vsel %vm375, %v1705, 0.0
        %v1708 = vsel %vm376, %v1706, 0.0
        %s1709 = sld [smem:[#allocation11 + $0x18]]
        %v1710 = vstv %s1709
        %v1711 = vmul.f32 %v1710, %v1707
        %v1712 = vmul.f32 %v1710, %v1708
        %v1715 = vrot.slane %v1712, 4
        %v1716 = vsel %vm552, %v1711, %v1715
        %v1718 = vadd.f32 %v1667, %v1716
        %s1719 = sld [smem:[#allocation11 + $0x3c]]
        %v1720 = vstv %s1719
        %v1721 = vmul.f32 %v1720, %v1707
        %v1722 = vmul.f32 %v1720, %v1708
        %v1725 = vrot.slane %v1722, 4
        %v1726 = vsel %vm552, %v1721, %v1725
        %v1727 = vrot.slane %v1726, 7
        %v1729 = vadd.f32 %v1678, %v1727
        %s1730 = sld [smem:[#allocation11 + $0x60]]
        %v1731 = vstv %s1730
        %v1732 = vmul.f32 %v1731, %v1707
        %v1733 = vmul.f32 %v1731, %v1708
        %v1736 = vrot.slane %v1733, 4
        %v1737 = vsel %vm552, %v1732, %v1736
        %v1738 = vrot.slane %v1737, 6
        %v1740 = vadd.f32 %v1689, %v1738
        %s1741 = sld [smem:[#allocation11 + $0x84]]
        %v1742 = vstv %s1741
        %v1743 = vmul.f32 %v1742, %v1707
        %v1744 = vmul.f32 %v1742, %v1708
        %v1747 = vrot.slane %v1744, 4
        %v1748 = vsel %vm552, %v1743, %v1747
        %v1749 = vrot.slane %v1748, 5
        %v1751 = vadd.f32 %v1700, %v1749
        %1752 = vrot.lane.b32.xlu0 %v1417, 112
        %v1753 = vpop.permute.xlu0 %1752
        %1754 = vrot.lane.b32.xlu0 %v1418, 112
        %v1755 = vpop.permute.xlu0 %1754
        %v1756 = vsel %vm878, %v1753, %v1755
        %v1757 = vsel %vm878, %v1755, %v1753
        %v1758 = vsel %vm369, %v1756, 0.0
        %v1759 = vsel %vm370, %v1757, 0.0
        %s1760 = sld [smem:[#allocation11 + $0x19]]
        %v1761 = vstv %s1760
        %v1762 = vmul.f32 %v1761, %v1758
        %v1763 = vmul.f32 %v1761, %v1759
        %v1766 = vrot.slane %v1763, 4
        %v1767 = vsel %vm552, %v1762, %v1766
        %v1769 = vadd.f32 %v1718, %v1767
        %s1770 = sld [smem:[#allocation11 + $0x3d]]
        %v1771 = vstv %s1770
        %v1772 = vmul.f32 %v1771, %v1758
        %v1773 = vmul.f32 %v1771, %v1759
        %v1776 = vrot.slane %v1773, 4
        %v1777 = vsel %vm552, %v1772, %v1776
        %v1778 = vrot.slane %v1777, 7
        %v1780 = vadd.f32 %v1729, %v1778
        %s1781 = sld [smem:[#allocation11 + $0x61]]
        %v1782 = vstv %s1781
        %v1783 = vmul.f32 %v1782, %v1758
        %v1784 = vmul.f32 %v1782, %v1759
        %v1787 = vrot.slane %v1784, 4
        %v1788 = vsel %vm552, %v1783, %v1787
        %v1789 = vrot.slane %v1788, 6
        %v1791 = vadd.f32 %v1740, %v1789
        %s1792 = sld [smem:[#allocation11 + $0x85]]
        %v1793 = vstv %s1792
        %v1794 = vmul.f32 %v1793, %v1758
        %v1795 = vmul.f32 %v1793, %v1759
        %v1798 = vrot.slane %v1795, 4
        %v1799 = vsel %vm552, %v1794, %v1798
        %v1800 = vrot.slane %v1799, 5
        %v1802 = vadd.f32 %v1751, %v1800
        %1803 = vrot.lane.b32.xlu0 %v1417, 111
        %v1804 = vpop.permute.xlu0 %1803
        %1805 = vrot.lane.b32.xlu0 %v1418, 111
        %v1806 = vpop.permute.xlu0 %1805
        %v1807 = vsel %vm930, %v1804, %v1806
        %v1808 = vsel %vm930, %v1806, %v1804
        %v1809 = vsel %vm377, %v1807, 0.0
        %v1810 = vsel %vm378, %v1808, 0.0
        %s1811 = sld [smem:[#allocation11 + $0x1a]]
        %v1812 = vstv %s1811
        %v1813 = vmul.f32 %v1812, %v1809
        %v1814 = vmul.f32 %v1812, %v1810
        %v1817 = vrot.slane %v1814, 4
        %v1818 = vsel %vm552, %v1813, %v1817
        %v1820 = vadd.f32 %v1769, %v1818
        %s1821 = sld [smem:[#allocation11 + $0x3e]]
        %v1822 = vstv %s1821
        %v1823 = vmul.f32 %v1822, %v1809
        %v1824 = vmul.f32 %v1822, %v1810
        %v1827 = vrot.slane %v1824, 4
        %v1828 = vsel %vm552, %v1823, %v1827
        %v1829 = vrot.slane %v1828, 7
        %v1831 = vadd.f32 %v1780, %v1829
        %s1832 = sld [smem:[#allocation11 + $0x62]]
        %v1833 = vstv %s1832
        %v1834 = vmul.f32 %v1833, %v1809
        %v1835 = vmul.f32 %v1833, %v1810
        %v1838 = vrot.slane %v1835, 4
        %v1839 = vsel %vm552, %v1834, %v1838
        %v1840 = vrot.slane %v1839, 6
        %v1842 = vadd.f32 %v1791, %v1840
        %s1843 = sld [smem:[#allocation11 + $0x86]]
        %v1844 = vstv %s1843
        %v1845 = vmul.f32 %v1844, %v1809
        %v1846 = vmul.f32 %v1844, %v1810
        %v1849 = vrot.slane %v1846, 4
        %v1850 = vsel %vm552, %v1845, %v1849
        %v1851 = vrot.slane %v1850, 5
        %v1853 = vadd.f32 %v1802, %v1851
        %v1855 = vperm.slane %v530, 0
        %v1856 = vperm.slane %v530, 4
        %1859 = vrot.lane.b32.xlu0 %v1855, 17
        %v1860 = vpop.permute.xlu0 %1859
        %1861 = vrot.lane.b32.xlu0 %v1856, 17
        %v1862 = vpop.permute.xlu0 %1861
        %v1863 = vsel %vm540, %v1860, %v1862
        %v1864 = vsel %vm540, %v1862, %v1860
        %v1865 = vsel %vm371, %v1864, 0.0
        %v1866 = vsel %vm372, %v1863, 0.0
        %s1867 = sld [smem:[#allocation11 + $0x1b]]
        %v1868 = vstv %s1867
        %v1869 = vmul.f32 %v1868, %v1865
        %v1870 = vmul.f32 %v1868, %v1866
        %v1873 = vrot.slane %v1870, 4
        %v1874 = vsel %vm552, %v1869, %v1873
        %v1876 = vadd.f32 %v1820, %v1874
        %s1877 = sld [smem:[#allocation11 + $0x3f]]
        %v1878 = vstv %s1877
        %v1879 = vmul.f32 %v1878, %v1865
        %v1880 = vmul.f32 %v1878, %v1866
        %v1883 = vrot.slane %v1880, 4
        %v1884 = vsel %vm552, %v1879, %v1883
        %v1885 = vrot.slane %v1884, 7
        %v1887 = vadd.f32 %v1831, %v1885
        %s1888 = sld [smem:[#allocation11 + $0x63]]
        %v1889 = vstv %s1888
        %v1890 = vmul.f32 %v1889, %v1865
        %v1891 = vmul.f32 %v1889, %v1866
        %v1894 = vrot.slane %v1891, 4
        %v1895 = vsel %vm552, %v1890, %v1894
        %v1896 = vrot.slane %v1895, 6
        %v1898 = vadd.f32 %v1842, %v1896
        %s1899 = sld [smem:[#allocation11 + $0x87]]
        %v1900 = vstv %s1899
        %v1901 = vmul.f32 %v1900, %v1865
        %v1902 = vmul.f32 %v1900, %v1866
        %v1905 = vrot.slane %v1902, 4
        %v1906 = vsel %vm552, %v1901, %v1905
        %v1907 = vrot.slane %v1906, 5
        %v1909 = vadd.f32 %v1853, %v1907
        %1910 = vrot.lane.b32.xlu0 %v1855, 16
        %v1911 = vpop.permute.xlu0 %1910
        %1912 = vrot.lane.b32.xlu0 %v1856, 16
        %v1913 = vpop.permute.xlu0 %1912
        %v1914 = vsel %vm593, %v1911, %v1913
        %v1915 = vsel %vm593, %v1913, %v1911
        %v1916 = vsel %vm367, %v1915, 0.0
        %v1917 = vsel %vm368, %v1914, 0.0
        %s1918 = sld [smem:[#allocation11 + $0x1c]]
        %v1919 = vstv %s1918
        %v1920 = vmul.f32 %v1919, %v1916
        %v1921 = vmul.f32 %v1919, %v1917
        %v1924 = vrot.slane %v1921, 4
        %v1925 = vsel %vm552, %v1920, %v1924
        %v1927 = vadd.f32 %v1876, %v1925
        %s1928 = sld [smem:[#allocation11 + $0x40]]
        %v1929 = vstv %s1928
        %v1930 = vmul.f32 %v1929, %v1916
        %v1931 = vmul.f32 %v1929, %v1917
        %v1934 = vrot.slane %v1931, 4
        %v1935 = vsel %vm552, %v1930, %v1934
        %v1936 = vrot.slane %v1935, 7
        %v1938 = vadd.f32 %v1887, %v1936
        %s1939 = sld [smem:[#allocation11 + $0x64]]
        %v1940 = vstv %s1939
        %v1941 = vmul.f32 %v1940, %v1916
        %v1942 = vmul.f32 %v1940, %v1917
        %v1945 = vrot.slane %v1942, 4
        %v1946 = vsel %vm552, %v1941, %v1945
        %v1947 = vrot.slane %v1946, 6
        %v1949 = vadd.f32 %v1898, %v1947
        %s1950 = sld [smem:[#allocation11 + $0x88]]
        %v1951 = vstv %s1950
        %v1952 = vmul.f32 %v1951, %v1916
        %v1953 = vmul.f32 %v1951, %v1917
        %v1956 = vrot.slane %v1953, 4
        %v1957 = vsel %vm552, %v1952, %v1956
        %v1958 = vrot.slane %v1957, 5
        %v1960 = vadd.f32 %v1909, %v1958
        %1961 = vrot.lane.b32.xlu0 %v1855, 15
        %v1962 = vpop.permute.xlu0 %1961
        %1963 = vrot.lane.b32.xlu0 %v1856, 15
        %v1964 = vpop.permute.xlu0 %1963
        %v1965 = vsel %vm645, %v1962, %v1964
        %v1966 = vsel %vm645, %v1964, %v1962
        %v1967 = vsel %vm373, %v1966, 0.0
        %v1968 = vsel %vm374, %v1965, 0.0
        %s1969 = sld [smem:[#allocation11 + $0x1d]]
        %v1970 = vstv %s1969
        %v1971 = vmul.f32 %v1970, %v1967
        %v1972 = vmul.f32 %v1970, %v1968
        %v1975 = vrot.slane %v1972, 4
        %v1976 = vsel %vm552, %v1971, %v1975
        %v1978 = vadd.f32 %v1927, %v1976
        %s1979 = sld [smem:[#allocation11 + $0x41]]
        %v1980 = vstv %s1979
        %v1981 = vmul.f32 %v1980, %v1967
        %v1982 = vmul.f32 %v1980, %v1968
        %v1985 = vrot.slane %v1982, 4
        %v1986 = vsel %vm552, %v1981, %v1985
        %v1987 = vrot.slane %v1986, 7
        %v1989 = vadd.f32 %v1938, %v1987
        %s1990 = sld [smem:[#allocation11 + $0x65]]
        %v1991 = vstv %s1990
        %v1992 = vmul.f32 %v1991, %v1967
        %v1993 = vmul.f32 %v1991, %v1968
        %v1996 = vrot.slane %v1993, 4
        %v1997 = vsel %vm552, %v1992, %v1996
        %v1998 = vrot.slane %v1997, 6
        %v2000 = vadd.f32 %v1949, %v1998
        %s2001 = sld [smem:[#allocation11 + $0x89]]
        %v2002 = vstv %s2001
        %v2003 = vmul.f32 %v2002, %v1967
        %v2004 = vmul.f32 %v2002, %v1968
        %v2007 = vrot.slane %v2004, 4
        %v2008 = vsel %vm552, %v2003, %v2007
        %v2009 = vrot.slane %v2008, 5
        %v2011 = vadd.f32 %v1960, %v2009
        %2012 = vrot.lane.b32.xlu0 %v1855, 1
        %v2013 = vpop.permute.xlu0 %2012
        %2014 = vrot.lane.b32.xlu0 %v1856, 1
        %v2015 = vpop.permute.xlu0 %2014
        %v2016 = vsel %vm697, %v2013, %v2015
        %v2017 = vsel %vm697, %v2015, %v2013
        %v2018 = vsel %vm363, %v2017, 0.0
        %v2019 = vsel %vm364, %v2016, 0.0
        %s2020 = sld [smem:[#allocation11 + $0x1e]]
        %v2021 = vstv %s2020
        %v2022 = vmul.f32 %v2021, %v2018
        %v2023 = vmul.f32 %v2021, %v2019
        %v2026 = vrot.slane %v2023, 4
        %v2027 = vsel %vm552, %v2022, %v2026
        %v2029 = vadd.f32 %v1978, %v2027
        %s2030 = sld [smem:[#allocation11 + $0x42]]
        %v2031 = vstv %s2030
        %v2032 = vmul.f32 %v2031, %v2018
        %v2033 = vmul.f32 %v2031, %v2019
        %v2036 = vrot.slane %v2033, 4
        %v2037 = vsel %vm552, %v2032, %v2036
        %v2038 = vrot.slane %v2037, 7
        %v2040 = vadd.f32 %v1989, %v2038
        %s2041 = sld [smem:[#allocation11 + $0x66]]
        %v2042 = vstv %s2041
        %v2043 = vmul.f32 %v2042, %v2018
        %v2044 = vmul.f32 %v2042, %v2019
        %v2047 = vrot.slane %v2044, 4
        %v2048 = vsel %vm552, %v2043, %v2047
        %v2049 = vrot.slane %v2048, 6
        %v2051 = vadd.f32 %v2000, %v2049
        %s2052 = sld [smem:[#allocation11 + $0x8a]]
        %v2053 = vstv %s2052
        %v2054 = vmul.f32 %v2053, %v2018
        %v2055 = vmul.f32 %v2053, %v2019
        %v2058 = vrot.slane %v2055, 4
        %v2059 = vsel %vm552, %v2054, %v2058
        %v2060 = vrot.slane %v2059, 5
        %v2062 = vadd.f32 %v2011, %v2060
        %s2063 = sld [smem:[#allocation11 + $0x1f]]
        %v2064 = vstv %s2063
        %v2065 = vmul.f32 %v2064, %v530
        %v2066 = vadd.f32 %v2029, %v2065
        %s2067 = sld [smem:[#allocation11 + $0x43]]
        %v2068 = vstv %s2067
        %v2069 = vmul.f32 %v2068, %v530
        %v2071 = vrot.slane %v2069, 7
        %v2073 = vadd.f32 %v2040, %v2071
        %s2074 = sld [smem:[#allocation11 + $0x67]]
        %v2075 = vstv %s2074
        %v2076 = vmul.f32 %v2075, %v530
        %v2078 = vrot.slane %v2076, 6
        %v2080 = vadd.f32 %v2051, %v2078
        %s2081 = sld [smem:[#allocation11 + $0x8b]]
        %v2082 = vstv %s2081
        %v2083 = vmul.f32 %v2082, %v530
        %v2085 = vrot.slane %v2083, 5
        %v2087 = vadd.f32 %v2062, %v2085
        %2088 = vrot.lane.b32.xlu0 %v1855, 127
        %v2089 = vpop.permute.xlu0 %2088
        %2090 = vrot.lane.b32.xlu0 %v1856, 127
        %v2091 = vpop.permute.xlu0 %2090
        %v2092 = vsel %vm774, %v2089, %v2091
        %v2093 = vsel %vm774, %v2091, %v2089
        %v2094 = vsel %vm365, %v2092, 0.0
        %v2095 = vsel %vm366, %v2093, 0.0
        %s2096 = sld [smem:[#allocation11 + $0x20]]
        %v2097 = vstv %s2096
        %v2098 = vmul.f32 %v2097, %v2094
        %v2099 = vmul.f32 %v2097, %v2095
        %v2102 = vrot.slane %v2099, 4
        %v2103 = vsel %vm552, %v2098, %v2102
        %v2105 = vadd.f32 %v2066, %v2103
        %s2106 = sld [smem:[#allocation11 + $0x44]]
        %v2107 = vstv %s2106
        %v2108 = vmul.f32 %v2107, %v2094
        %v2109 = vmul.f32 %v2107, %v2095
        %v2112 = vrot.slane %v2109, 4
        %v2113 = vsel %vm552, %v2108, %v2112
        %v2114 = vrot.slane %v2113, 7
        %v2116 = vadd.f32 %v2073, %v2114
        %s2117 = sld [smem:[#allocation11 + $0x68]]
        %v2118 = vstv %s2117
        %v2119 = vmul.f32 %v2118, %v2094
        %v2120 = vmul.f32 %v2118, %v2095
        %v2123 = vrot.slane %v2120, 4
        %v2124 = vsel %vm552, %v2119, %v2123
        %v2125 = vrot.slane %v2124, 6
        %v2127 = vadd.f32 %v2080, %v2125
        %s2128 = sld [smem:[#allocation11 + $0x8c]]
        %v2129 = vstv %s2128
        %v2130 = vmul.f32 %v2129, %v2094
        %v2131 = vmul.f32 %v2129, %v2095
        %v2134 = vrot.slane %v2131, 4
        %v2135 = vsel %vm552, %v2130, %v2134
        %v2136 = vrot.slane %v2135, 5
        %v2138 = vadd.f32 %v2087, %v2136
        %2139 = vrot.lane.b32.xlu0 %v1855, 113
        %v2140 = vpop.permute.xlu0 %2139
        %2141 = vrot.lane.b32.xlu0 %v1856, 113
        %v2142 = vpop.permute.xlu0 %2141
        %v2143 = vsel %vm826, %v2140, %v2142
        %v2144 = vsel %vm826, %v2142, %v2140
        %v2145 = vsel %vm375, %v2143, 0.0
        %v2146 = vsel %vm376, %v2144, 0.0
        %s2147 = sld [smem:[#allocation11 + $0x21]]
        %v2148 = vstv %s2147
        %v2149 = vmul.f32 %v2148, %v2145
        %v2150 = vmul.f32 %v2148, %v2146
        %v2153 = vrot.slane %v2150, 4
        %v2154 = vsel %vm552, %v2149, %v2153
        %v2156 = vadd.f32 %v2105, %v2154
        %s2157 = sld [smem:[#allocation11 + $0x45]]
        %v2158 = vstv %s2157
        %v2159 = vmul.f32 %v2158, %v2145
        %v2160 = vmul.f32 %v2158, %v2146
        %v2163 = vrot.slane %v2160, 4
        %v2164 = vsel %vm552, %v2159, %v2163
        %v2165 = vrot.slane %v2164, 7
        %v2167 = vadd.f32 %v2116, %v2165
        %s2168 = sld [smem:[#allocation11 + $0x69]]
        %v2169 = vstv %s2168
        %v2170 = vmul.f32 %v2169, %v2145
        %v2171 = vmul.f32 %v2169, %v2146
        %v2174 = vrot.slane %v2171, 4
        %v2175 = vsel %vm552, %v2170, %v2174
        %v2176 = vrot.slane %v2175, 6
        %v2178 = vadd.f32 %v2127, %v2176
        %s2179 = sld [smem:[#allocation11 + $0x8d]]
        %v2180 = vstv %s2179
        %v2181 = vmul.f32 %v2180, %v2145
        %v2182 = vmul.f32 %v2180, %v2146
        %v2185 = vrot.slane %v2182, 4
        %v2186 = vsel %vm552, %v2181, %v2185
        %v2187 = vrot.slane %v2186, 5
        %v2189 = vadd.f32 %v2138, %v2187
        %2190 = vrot.lane.b32.xlu0 %v1855, 112
        %v2191 = vpop.permute.xlu0 %2190
        %2192 = vrot.lane.b32.xlu0 %v1856, 112
        %v2193 = vpop.permute.xlu0 %2192
        %v2194 = vsel %vm878, %v2191, %v2193
        %v2195 = vsel %vm878, %v2193, %v2191
        %v2196 = vsel %vm369, %v2194, 0.0
        %v2197 = vsel %vm370, %v2195, 0.0
        %s2198 = sld [smem:[#allocation11 + $0x22]]
        %v2199 = vstv %s2198
        %v2200 = vmul.f32 %v2199, %v2196
        %v2201 = vmul.f32 %v2199, %v2197
        %v2204 = vrot.slane %v2201, 4
        %v2205 = vsel %vm552, %v2200, %v2204
        %v2207 = vadd.f32 %v2156, %v2205
        %s2208 = sld [smem:[#allocation11 + $0x46]]
        %v2209 = vstv %s2208
        %v2210 = vmul.f32 %v2209, %v2196
        %v2211 = vmul.f32 %v2209, %v2197
        %v2214 = vrot.slane %v2211, 4
        %v2215 = vsel %vm552, %v2210, %v2214
        %v2216 = vrot.slane %v2215, 7
        %v2218 = vadd.f32 %v2167, %v2216
        %s2219 = sld [smem:[#allocation11 + $0x6a]]
        %v2220 = vstv %s2219
        %v2221 = vmul.f32 %v2220, %v2196
        %v2222 = vmul.f32 %v2220, %v2197
        %v2225 = vrot.slane %v2222, 4
        %v2226 = vsel %vm552, %v2221, %v2225
        %v2227 = vrot.slane %v2226, 6
        %v2229 = vadd.f32 %v2178, %v2227
        %s2230 = sld [smem:[#allocation11 + $0x8e]]
        %v2231 = vstv %s2230
        %v2232 = vmul.f32 %v2231, %v2196
        %v2233 = vmul.f32 %v2231, %v2197
        %v2236 = vrot.slane %v2233, 4
        %v2237 = vsel %vm552, %v2232, %v2236
        %v2238 = vrot.slane %v2237, 5
        %v2240 = vadd.f32 %v2189, %v2238
        %2241 = vrot.lane.b32.xlu0 %v1855, 111
        %v2242 = vpop.permute.xlu0 %2241
        %2243 = vrot.lane.b32.xlu0 %v1856, 111
        %v2244 = vpop.permute.xlu0 %2243
        %v2245 = vsel %vm930, %v2242, %v2244
        %v2246 = vsel %vm930, %v2244, %v2242
        %v2247 = vsel %vm377, %v2245, 0.0
        %v2248 = vsel %vm378, %v2246, 0.0
        %s2249 = sld [smem:[#allocation11 + $0x23]]
        %v2250 = vstv %s2249
        %v2251 = vmul.f32 %v2250, %v2247
        %v2252 = vmul.f32 %v2250, %v2248
        %v2255 = vrot.slane %v2252, 4
        %v2256 = vsel %vm552, %v2251, %v2255
        %v2258 = vadd.f32 %v2207, %v2256
        %s2259 = sld [smem:[#allocation11 + $0x47]]
        %v2260 = vstv %s2259
        %v2261 = vmul.f32 %v2260, %v2247
        %v2262 = vmul.f32 %v2260, %v2248
        %v2265 = vrot.slane %v2262, 4
        %v2266 = vsel %vm552, %v2261, %v2265
        %v2267 = vrot.slane %v2266, 7
        %v2269 = vadd.f32 %v2218, %v2267
        %s2270 = sld [smem:[#allocation11 + $0x6b]]
        %v2271 = vstv %s2270
        %v2272 = vmul.f32 %v2271, %v2247
        %v2273 = vmul.f32 %v2271, %v2248
        %v2276 = vrot.slane %v2273, 4
        %v2277 = vsel %vm552, %v2272, %v2276
        %v2278 = vrot.slane %v2277, 6
        %v2280 = vadd.f32 %v2229, %v2278
        %s2281 = sld [smem:[#allocation11 + $0x8f]]
        %v2282 = vstv %s2281
        %v2283 = vmul.f32 %v2282, %v2247
        %v2284 = vmul.f32 %v2282, %v2248
        %v2287 = vrot.slane %v2284, 4
        %v2288 = vsel %vm552, %v2283, %v2287
        %v2289 = vrot.slane %v2288, 5
        %v2291 = vadd.f32 %v2240, %v2289
        %v2293 = vperm.slane %v2258, 0
        %v2294 = vperm.slane %v2258, 4
        %v2298 = vperm.slane %v2269, 1
        %v2299 = vperm.slane %v2269, 5
        %v2303 = vperm.slane %v2280, 2
        %v2304 = vperm.slane %v2280, 6
        %v2308 = vperm.slane %v2291, 3
        %v2309 = vperm.slane %v2291, 7
        %vm2312 = vcmask 1040384
        %v2313 = vsel %vm2312, %v2293, %v2298
        %v2314 = vsel %vm2312, %v2294, %v2299
        %vm2315 = vcmask 1041408
        %v2316 = vsel %vm2315, %v2313, %v2303
        %v2317 = vsel %vm2315, %v2314, %v2304
        %vm2318 = vcmask 1042432
        %v2319 = vsel %vm2318, %v2316, %v2308
        %v2320 = vsel %vm2318, %v2317, %v2309
        %v2323 = vrot.slane %v2320, 4
        %v2324 = vsel %vm552, %v2319, %v2323
        %2326 = vst [vmem:[%s334] sm:$0xff] %v2324
        %s2327 = sand.u32 %s166, 1
        %s2328 = scalar_lea.sflag [#allocation4], %s2327
        %s2329 = sand.u32 %s166, 1
        %s2330 = smul.addr %s2329, 8
        %s2331 = scalar_lea.vmem [#allocation14], %s2330
        // Predicated region
        $region69: #{tpu_custom_call.1} parent=43 // pred_check
          %p2332 = pneg %p176
        $region70: #{tpu_custom_call.1} parent=43 // pred_check_branch
          %2334 = sbr.rel (%p2332) target = $region72
        $region71: #{tpu_custom_call.1} parent=43 // pred_region
          %2336 = vsyncadd %s2328, 0
          %s2337 = smul.addr %s27, 2
          %s2338 = smul.addr %s2337, 4
          %s2339 = scalar_lea.hbm %s6, %s2338
          %s2341 = sshll.u32 %s2331, 4
          %s2342 = int_to_ptr.vmem [resolvable:$true] %s2341
          %s2343 = sshll.u32 %s2339, 4
          %s2344 = int_to_ptr.hbm [resolvable:$true] %s2343
          %2346 = dma.vmem_to_hbm [thread:$0]  %s2342, 128, %s2344, %s2328
        $region72: #{tpu_custom_call.1} parent=43 // pred_fallthru
          _
      $region44: #{tpu_custom_call.1} parent=5 // pred_fallthru
        _
      %p2347 = scmp.le.s32.totalorder 2, %s22
      // Predicated region
      $region73: #{tpu_custom_call.1} parent=5 // pred_check
        %p2348 = pneg %p2347
      $region74: #{tpu_custom_call.1} parent=5 // pred_check_branch
        %2350 = sbr.rel (%p2348) target = $region76
      $region75: #{tpu_custom_call.1} parent=5 // pred_region
        %s2351 = ssub.s32 %s22, 2
        // Predicated region
        $region77: #{tpu_custom_call.1} parent=75 // pred_check
          %p2352 = pneg %p182
        $region78: #{tpu_custom_call.1} parent=75 // pred_check_branch
          %2354 = sbr.rel (%p2352) target = $region80
        $region79: #{tpu_custom_call.1} parent=75 // pred_region
          %s2355 = sand.u32 %s167, 1
          %s2356 = scalar_lea.sflag [#allocation4], %s2355
          %s2357 = sand.u32 %s167, 1
          %s2358 = smul.addr %s2357, 8
          %s2359 = scalar_lea.vmem [#allocation14], %s2358
          %2361 = dma.done %s2356, 128
        $region80: #{tpu_custom_call.1} parent=75 // pred_fallthru
          _
      $region76: #{tpu_custom_call.1} parent=5 // pred_fallthru
        _
    $region6: #{tpu_custom_call.1} parent=1 // loop_footer
      %s26 = sadd.s32 1, %s22
    $region7: #{tpu_custom_call.1} parent=1 // loop_footer_branch
      %21 = sbr.rel target = $region3
    $region8: #{tpu_custom_call.1} parent=1 // loop_exit
      _
    %2362 = vsyncpa [#allocation3], 1
    %s2363 = scalar_lea.sflag [#allocation3], 1
    %2364 = vsyncpa %s2363, 1
    %2365 = vsyncpa [#allocation4], 1
    %s2366 = scalar_lea.sflag [#allocation4], 1
    %2367 = vsyncpa %s2366, 1
    %2368 = vsyncpa [#allocation5], 1
    %s2369 = scalar_lea.sflag [#allocation5], 1
    %2370 = vsyncpa %s2369, 1
    %2371 = vsyncpa [#allocation8], 1
    %2372 = vsyncpa [#allocation6], 1
    %s2373 = scalar_lea.sflag [#allocation6], 1
    %2374 = vsyncpa %s2373, 1
    %2375 = vsyncpa [#allocation12], 1

</llo_original>
